<compile_context>
chip_gen: v7x
topology: tpu7x:2x2x1
jax: 0.10.0
libtpu: 0.0.40
codegen_flags: <defaults>
</compile_context>

<pallas_src>
import jax
import jax.numpy as jnp
from jax.experimental import pallas as pl
from jax.experimental.pallas import tpu as pltpu


def decoder_rnn_kernel(x_ref, h0_ref, c0_ref, wih_ref, whh_ref, b_ref,
                       wout_ref, bout_ref,
                       y_ref, hT_ref, cT_ref,
                       h_scr, c_scr):
    TB, D = x_ref.shape
    B, H = h0_ref.shape
    Tc = TB // B
    ct = pl.program_id(0)

    # Carry init on the first chunk; h_scr/c_scr persist across chunks.
    @pl.when(ct == 0)
    def _():
        h_scr[...] = h0_ref[...].astype(jnp.float32)
        c_scr[...] = c0_ref[...].astype(jnp.float32)

    # ReLU on the whole chunk + input projection lifted out of the recurrence:
    # one (Tc*B, D) @ (D, 4H) GEMM with the bias folded in. Rows are time-major,
    # so step t's gates are the contiguous sublane slab gx[t*B:(t+1)*B, :].
    xr = jnp.maximum(x_ref[...], 0.0).astype(jnp.float32)
    gx = jnp.dot(xr, wih_ref[...], preferred_element_type=jnp.float32) + b_ref[...]

    whh = whh_ref[...]

    # Hoisted per-lane FMA constants: acts = sigmoid(z)*ga + gb recovers
    # tanh(z0) = 2*sigmoid(2*z0) - 1 on the g-gate lanes (whose weight/bias
    # columns were pre-scaled by 2 in the wrapper) with one VPU FMA per step.
    lane = jax.lax.broadcasted_iota(jnp.int32, (B, 4 * H), 1)
    g_mask = (lane >= 2 * H) & (lane < 3 * H)
    ga = jnp.where(g_mask, 2.0, 1.0).astype(jnp.float32)
    gb = jnp.where(g_mask, -1.0, 0.0).astype(jnp.float32)

    h = h_scr[...]
    c = c_scr[...]
    hs_list = []

    # Short static recurrence, fully unrolled: one MXU matmul + one full-width
    # sigmoid (EUP) per step; everything else is full-vreg VPU work.
    for t in range(Tc):
        gates = (gx[t * B:(t + 1) * B, :]
                 + jnp.dot(h, whh, preferred_element_type=jnp.float32))
        s = jax.nn.sigmoid(gates)          # single 4H-lane EUP dispatch
        acts = s * ga + gb                 # tanh on g lanes via one FMA
        i_g = acts[:, 0 * H:1 * H]
        f_g = acts[:, 1 * H:2 * H]
        g_g = acts[:, 2 * H:3 * H]
        o_g = acts[:, 3 * H:4 * H]
        c = f_g * c + i_g * g_g
        h = o_g * jnp.tanh(c)
        hs_list.append(h)                  # stays in vregs; no masked VMEM staging

    # Persist carry for the next chunk.
    h_scr[...] = h
    c_scr[...] = c

    # Deferred output projection: one (Tc*B, H) @ (H, O_pad) GEMM, time-major and
    # lane-dense, stored with unmasked full-lane vst.
    hs = jnp.concatenate(hs_list, axis=0)
    y = jnp.dot(hs, wout_ref[...], preferred_element_type=jnp.float32) + bout_ref[...]
    y_ref[...] = y.astype(y_ref.dtype)

    # Final hidden/cell written once, on the last chunk only.
    @pl.when(ct == pl.num_programs(0) - 1)
    def _():
        hT_ref[...] = h.astype(hT_ref.dtype)
        cT_ref[...] = c.astype(cT_ref.dtype)


def decoder_rnn_forward(inputs, hidden, cell, params, t_chunk=None):
    """inputs: (B, T, D) ; hidden, cell: (1, B, H).
    Returns (output (B, T, O), hidden (1, B, H), cell (1, B, H))."""
    w_ih, w_hh, b_ih, b_hh, w_out, b_out = params
    B, T, D = inputs.shape
    H = hidden.shape[-1]
    O = w_out.shape[0]
    O_pad = ((O + 127) // 128) * 128           # lane-dense output width

    if t_chunk is None:
        t_chunk = T                            # whole sequence in one grid step here
    assert T % t_chunk == 0
    n_chunks = T // t_chunk
    if n_chunks > 1:
        # (8,128) BlockSpec constraint on the flattened (T*B, .) x/y arrays.
        assert (t_chunk * B) % 8 == 0

    # Matmul-friendly transposed weights. Scale the g-gate (cell candidate) columns
    # by 2 so the kernel can use one full-width sigmoid and recover tanh as 2s - 1.
    gate_scale = jnp.concatenate([
        jnp.ones((2 * H,), jnp.float32),
        jnp.full((H,), 2.0, jnp.float32),
        jnp.ones((H,), jnp.float32),
    ])
    wih_t = w_ih.T * gate_scale[None, :]                        # (D, 4H)
    whh_t = w_hh.T * gate_scale[None, :]                        # (H, 4H)
    bias = ((b_ih + b_hh) * gate_scale).reshape(1, 4 * H)       # (1, 4H)
    wout_p = jnp.zeros((H, O_pad), jnp.float32).at[:, :O].set(w_out.T)
    bout_p = jnp.zeros((1, O_pad), jnp.float32).at[:, :O].set(b_out[None, :])

    # Time-major, flattened input: step t occupies contiguous rows [t*B, (t+1)*B).
    # These wrapper-side transposes/reshapes touch a few KB -- negligible.
    x_tm = jnp.transpose(inputs, (1, 0, 2)).reshape(T * B, D)

    h0 = hidden[0]                                              # (B, H)
    c0 = cell[0]                                                # (B, H)

    cost = pl.CostEstimate(
        flops=2 * T * B * (D * 4 * H + H * 4 * H + H * O),
        transcendentals=T * B * 5 * H,
        bytes_accessed=4 * (x_tm.size + 4 * B * H + wih_t.size + whh_t.size
                            + bias.size + wout_p.size + bout_p.size
                            + T * B * O_pad),
    )

    grid_spec = pltpu.PrefetchScalarGridSpec(
        num_scalar_prefetch=0,
        grid=(n_chunks,),
        in_specs=[
            pl.BlockSpec((t_chunk * B, D), lambda ct: (ct, 0)),     # x, time-major flat
            pl.BlockSpec((B, H), lambda ct: (0, 0)),                # h0
            pl.BlockSpec((B, H), lambda ct: (0, 0)),                # c0
            pl.BlockSpec((D, 4 * H), lambda ct: (0, 0)),            # W_ih^T (g-cols x2)
            pl.BlockSpec((H, 4 * H), lambda ct: (0, 0)),            # W_hh^T (g-cols x2)
            pl.BlockSpec((1, 4 * H), lambda ct: (0, 0)),            # bias   (g x2)
            pl.BlockSpec((H, O_pad), lambda ct: (0, 0)),            # W_out^T padded
            pl.BlockSpec((1, O_pad), lambda ct: (0, 0)),            # b_out padded
        ],
        out_specs=[
            pl.BlockSpec((t_chunk * B, O_pad), lambda ct: (ct, 0)),  # y, time-major flat
            pl.BlockSpec((B, H), lambda ct: (0, 0)),                 # final hidden
            pl.BlockSpec((B, H), lambda ct: (0, 0)),                 # final cell
        ],
        scratch_shapes=[
            pltpu.VMEM((B, H), jnp.float32),           # recurrent h carry
            pltpu.VMEM((B, H), jnp.float32),           # recurrent c carry
        ],
    )

    y_tm, h_fin, c_fin = pl.pallas_call(
        decoder_rnn_kernel,
        out_shape=(
            jax.ShapeDtypeStruct((T * B, O_pad), jnp.float32),
            jax.ShapeDtypeStruct((B, H), jnp.float32),
            jax.ShapeDtypeStruct((B, H), jnp.float32),
        ),
        grid_spec=grid_spec,
        compiler_params=pltpu.CompilerParams(
            dimension_semantics=("arbitrary",)),   # time recurrence is sequential
        cost_estimate=cost,
    )(x_tm, h0, c0, wih_t, whh_t, bias, wout_p, bout_p)

    # Un-flatten to (B, T, O); tiny wrapper ops. TODO(synk): at large T fuse the
    # un-pad slice into the downstream consumer to avoid the extra HBM pass (v5e).
    output = y_tm.reshape(T, B, O_pad).transpose(1, 0, 2)[:, :, :O]
    return output, h_fin[None], c_fin[None]


def reference_forward(inputs, hidden, cell, params):
    """Pure-JAX reference matching PyTorch LSTM semantics (gate order i,f,g,o)."""
    w_ih, w_hh, b_ih, b_hh, w_out, b_out = params
    H = hidden.shape[-1]
    x = jnp.maximum(inputs, 0.0)
    h, c = hidden[0], cell[0]
    ys = []
    for t in range(x.shape[1]):
        gates = x[:, t] @ w_ih.T + h @ w_hh.T + b_ih + b_hh
        i = jax.nn.sigmoid(gates[:, 0 * H:1 * H])
        f = jax.nn.sigmoid(gates[:, 1 * H:2 * H])
        g = jnp.tanh(gates[:, 2 * H:3 * H])
        o = jax.nn.sigmoid(gates[:, 3 * H:4 * H])
        c = f * c + i * g
        h = o * jnp.tanh(c)
        ys.append(h)
    hs = jnp.stack(ys, axis=1)                # (B, T, H)
    out = hs @ w_out.T + b_out
    return out, h[None], c[None]


if __name__ == "__main__":
    B, T = 2, 8
    LSTM_OUT, LSTM_HIDDEN, OUTPUT_SIZE = 32, 32, 16

    key = jax.random.PRNGKey(0)
    ks = jax.random.split(key, 9)
    s = 1.0 / jnp.sqrt(LSTM_HIDDEN)
    w_ih = jax.random.uniform(ks[0], (4 * LSTM_HIDDEN, LSTM_OUT), jnp.float32, -s, s)
    w_hh = jax.random.uniform(ks[1], (4 * LSTM_HIDDEN, LSTM_HIDDEN), jnp.float32, -s, s)
    b_ih = jax.random.uniform(ks[2], (4 * LSTM_HIDDEN,), jnp.float32, -s, s)
    b_hh = jax.random.uniform(ks[3], (4 * LSTM_HIDDEN,), jnp.float32, -s, s)
    w_out = jax.random.uniform(ks[4], (OUTPUT_SIZE, LSTM_HIDDEN), jnp.float32, -s, s)
    b_out = jax.random.uniform(ks[5], (OUTPUT_SIZE,), jnp.float32, -s, s)
    params = (w_ih, w_hh, b_ih, b_hh, w_out, b_out)

    inputs = jax.random.normal(ks[6], (B, T, LSTM_OUT), jnp.float32)
    hidden = jax.random.normal(ks[7], (1, B, LSTM_HIDDEN), jnp.float32)
    cell = jax.random.normal(ks[8], (1, B, LSTM_HIDDEN), jnp.float32)

    out, h_fin, c_fin = decoder_rnn_forward(inputs, hidden, cell, params)
    jax.block_until_ready((out, h_fin, c_fin))

    ref_out, ref_h, ref_c = reference_forward(inputs, hidden, cell, params)
    assert jnp.allclose(out, ref_out, atol=1e-4, rtol=1e-4)
    assert jnp.allclose(h_fin, ref_h, atol=1e-4, rtol=1e-4)
    assert jnp.allclose(c_fin, ref_c, atol=1e-4, rtol=1e-4)

    print("KERNEL_OK")
</pallas_src>

<mosaic_0001>
module attributes {stable_mosaic.version = 11 : i64} {
  func.func @decoder_rnn_kernel(%arg0: i32, %arg1: memref<16x32xf32, #tpu.memory_space<vmem>>, %arg2: memref<2x32xf32, #tpu.memory_space<vmem>>, %arg3: memref<2x32xf32, #tpu.memory_space<vmem>>, %arg4: memref<32x128xf32, #tpu.memory_space<vmem>>, %arg5: memref<32x128xf32, #tpu.memory_space<vmem>>, %arg6: memref<1x128xf32, #tpu.memory_space<vmem>>, %arg7: memref<32x128xf32, #tpu.memory_space<vmem>>, %arg8: memref<1x128xf32, #tpu.memory_space<vmem>>, %arg9: memref<16x128xf32, #tpu.memory_space<vmem>>, %arg10: memref<2x32xf32, #tpu.memory_space<vmem>>, %arg11: memref<2x32xf32, #tpu.memory_space<vmem>>, %arg12: memref<2x32xf32, #tpu.memory_space<vmem>>, %arg13: memref<2x32xf32, #tpu.memory_space<vmem>>) attributes {dimension_semantics = [#tpu.dimension_semantics<arbitrary>], iteration_bounds = array<i64: 1>, scalar_prefetch = 0 : i64, scratch_operands = 2 : i64, tpu.core_type = #tpu.core_type<tc>, window_params = [{transform_indices = @transform_0, window_bounds = array<i64: 16, 32>}, {pipeline_mode = #tpu.pipeline_mode<synchronous>, transform_indices = @transform_1, window_bounds = array<i64: 2, 32>}, {pipeline_mode = #tpu.pipeline_mode<synchronous>, transform_indices = @transform_2, window_bounds = array<i64: 2, 32>}, {pipeline_mode = #tpu.pipeline_mode<synchronous>, transform_indices = @transform_3, window_bounds = array<i64: 32, 128>}, {pipeline_mode = #tpu.pipeline_mode<synchronous>, transform_indices = @transform_4, window_bounds = array<i64: 32, 128>}, {pipeline_mode = #tpu.pipeline_mode<synchronous>, transform_indices = @transform_5, window_bounds = array<i64: 1, 128>}, {pipeline_mode = #tpu.pipeline_mode<synchronous>, transform_indices = @transform_6, window_bounds = array<i64: 32, 128>}, {pipeline_mode = #tpu.pipeline_mode<synchronous>, transform_indices = @transform_7, window_bounds = array<i64: 1, 128>}, {transform_indices = @transform_8, window_bounds = array<i64: 16, 128>}, {pipeline_mode = #tpu.pipeline_mode<synchronous>, transform_indices = @transform_9, window_bounds = array<i64: 2, 32>}, {pipeline_mode = #tpu.pipeline_mode<synchronous>, transform_indices = @transform_10, window_bounds = array<i64: 2, 32>}]} {
    %c0_i32 = arith.constant 0 : i32
    %0 = arith.cmpi eq, %arg0, %c0_i32 : i32
    %1 = arith.extui %0 : i1 to i32
    %c0_i32_0 = arith.constant 0 : i32
    %2 = arith.cmpi ne, %1, %c0_i32_0 : i32
    scf.if %2 {
      %c0_46 = arith.constant 0 : index
      %c0_47 = arith.constant 0 : index
      %190 = vector.load %arg2[%c0_46, %c0_47] : memref<2x32xf32, #tpu.memory_space<vmem>>, vector<2x32xf32>
      %c0_48 = arith.constant 0 : index
      %c0_49 = arith.constant 0 : index
      %191 = vector.load %arg12[%c0_48, %c0_49] : memref<2x32xf32, #tpu.memory_space<vmem>>, vector<2x32xf32>
      tpu.vector_store %arg12[%c0_48, %c0_49], %190 {strides = array<i32>} : memref<2x32xf32, #tpu.memory_space<vmem>>, vector<2x32xf32>,
      %c0_50 = arith.constant 0 : index
      %c0_51 = arith.constant 0 : index
      %192 = vector.load %arg3[%c0_50, %c0_51] : memref<2x32xf32, #tpu.memory_space<vmem>>, vector<2x32xf32>
      %c0_52 = arith.constant 0 : index
      %c0_53 = arith.constant 0 : index
      %193 = vector.load %arg13[%c0_52, %c0_53] : memref<2x32xf32, #tpu.memory_space<vmem>>, vector<2x32xf32>
      tpu.vector_store %arg13[%c0_52, %c0_53], %192 {strides = array<i32>} : memref<2x32xf32, #tpu.memory_space<vmem>>, vector<2x32xf32>,
    } else {
    }
    %c0 = arith.constant 0 : index
    %c0_1 = arith.constant 0 : index
    %3 = vector.load %arg1[%c0, %c0_1] : memref<16x32xf32, #tpu.memory_space<vmem>>, vector<16x32xf32>
    %cst = arith.constant 0.000000e+00 : f32
    %4 = vector.broadcast %cst : f32 to vector<16x32xf32>
    %5 = arith.maximumf %3, %4 : vector<16x32xf32>
    %c0_2 = arith.constant 0 : index
    %c0_3 = arith.constant 0 : index
    %6 = vector.load %arg4[%c0_2, %c0_3] : memref<32x128xf32, #tpu.memory_space<vmem>>, vector<32x128xf32>
    %cst_4 = arith.constant dense<0.000000e+00> : vector<16x128xf32>
    %7 = tpu.matmul %5, %6, %cst_4 {dimension_numbers = #tpu.dot_dimension_numbers<[1], [0], [0], [1], [0, 0, 1, 1], [], []>} : vector<16x32xf32>, vector<32x128xf32>, vector<16x128xf32> -> vector<16x128xf32>
    %c0_5 = arith.constant 0 : index
    %c0_6 = arith.constant 0 : index
    %8 = vector.load %arg6[%c0_5, %c0_6] : memref<1x128xf32, #tpu.memory_space<vmem>>, vector<1x128xf32>
    %9 = vector.broadcast %8 : vector<1x128xf32> to vector<16x128xf32>
    %10 = arith.addf %7, %9 : vector<16x128xf32>
    %c0_7 = arith.constant 0 : index
    %c0_8 = arith.constant 0 : index
    %11 = vector.load %arg5[%c0_7, %c0_8] : memref<32x128xf32, #tpu.memory_space<vmem>>, vector<32x128xf32>
    %12 = tpu.iota {dimensions = array<i32: 1>} : vector<2x128xi32>
    %c64_i32 = arith.constant 64 : i32
    %13 = vector.broadcast %c64_i32 : i32 to vector<2x128xi32>
    %14 = arith.cmpi sge, %12, %13 : vector<2x128xi32>
    %c96_i32 = arith.constant 96 : i32
    %15 = vector.broadcast %c96_i32 : i32 to vector<2x128xi32>
    %16 = arith.cmpi slt, %12, %15 : vector<2x128xi32>
    %17 = arith.andi %14, %16 : vector<2x128xi1>
    %cst_9 = arith.constant 2.000000e+00 : f32
    %cst_10 = arith.constant 1.000000e+00 : f32
    %18 = vector.broadcast %cst_9 : f32 to vector<2x128xf32>
    %19 = vector.broadcast %cst_10 : f32 to vector<2x128xf32>
    %20 = arith.select %17, %18, %19 : vector<2x128xi1>, vector<2x128xf32>
    %cst_11 = arith.constant -1.000000e+00 : f32
    %cst_12 = arith.constant 0.000000e+00 : f32
    %21 = vector.broadcast %cst_11 : f32 to vector<2x128xf32>
    %22 = vector.broadcast %cst_12 : f32 to vector<2x128xf32>
    %23 = arith.select %17, %21, %22 : vector<2x128xi1>, vector<2x128xf32>
    %c0_13 = arith.constant 0 : index
    %c0_14 = arith.constant 0 : index
    %24 = vector.load %arg12[%c0_13, %c0_14] : memref<2x32xf32, #tpu.memory_space<vmem>>, vector<2x32xf32>
    %c0_15 = arith.constant 0 : index
    %c0_16 = arith.constant 0 : index
    %25 = vector.load %arg13[%c0_15, %c0_16] : memref<2x32xf32, #tpu.memory_space<vmem>>, vector<2x32xf32>
    %26 = vector.extract_strided_slice %10 {offsets = [0, 0], sizes = [2, 128], strides = [1, 1]} : vector<16x128xf32> to vector<2x128xf32>
    %cst_17 = arith.constant dense<0.000000e+00> : vector<2x128xf32>
    %27 = tpu.matmul %24, %11, %cst_17 {dimension_numbers = #tpu.dot_dimension_numbers<[1], [0], [0], [1], [0, 0, 1, 1], [], []>} : vector<2x32xf32>, vector<32x128xf32>, vector<2x128xf32> -> vector<2x128xf32>
    %28 = arith.addf %26, %27 : vector<2x128xf32>
    %29 = arith.negf %28 : vector<2x128xf32>
    %30 = math.exp %29 : vector<2x128xf32>
    %cst_18 = arith.constant 1.000000e+00 : f32
    %31 = vector.broadcast %cst_18 : f32 to vector<2x128xf32>
    %32 = arith.addf %31, %30 : vector<2x128xf32>
    %33 = arith.divf %31, %32 : vector<2x128xf32>
    %34 = arith.mulf %33, %20 : vector<2x128xf32>
    %35 = arith.addf %34, %23 : vector<2x128xf32>
    %36 = vector.extract_strided_slice %35 {offsets = [0, 0], sizes = [2, 32], strides = [1, 1]} : vector<2x128xf32> to vector<2x32xf32>
    %37 = vector.extract_strided_slice %35 {offsets = [0, 32], sizes = [2, 32], strides = [1, 1]} : vector<2x128xf32> to vector<2x32xf32>
    %38 = vector.extract_strided_slice %35 {offsets = [0, 64], sizes = [2, 32], strides = [1, 1]} : vector<2x128xf32> to vector<2x32xf32>
    %39 = vector.extract_strided_slice %35 {offsets = [0, 96], sizes = [2, 32], strides = [1, 1]} : vector<2x128xf32> to vector<2x32xf32>
    %40 = arith.mulf %37, %25 : vector<2x32xf32>
    %41 = arith.mulf %36, %38 : vector<2x32xf32>
    %42 = arith.addf %40, %41 : vector<2x32xf32>
    %43 = math.tanh %42 : vector<2x32xf32>
    %44 = arith.mulf %39, %43 : vector<2x32xf32>
    %45 = vector.extract_strided_slice %10 {offsets = [2, 0], sizes = [2, 128], strides = [1, 1]} : vector<16x128xf32> to vector<2x128xf32>
    %cst_19 = arith.constant dense<0.000000e+00> : vector<2x128xf32>
    %46 = tpu.matmul %44, %11, %cst_19 {dimension_numbers = #tpu.dot_dimension_numbers<[1], [0], [0], [1], [0, 0, 1, 1], [], []>} : vector<2x32xf32>, vector<32x128xf32>, vector<2x128xf32> -> vector<2x128xf32>
    %47 = arith.addf %45, %46 : vector<2x128xf32>
    %48 = arith.negf %47 : vector<2x128xf32>
    %49 = math.exp %48 : vector<2x128xf32>
    %cst_20 = arith.constant 1.000000e+00 : f32
    %50 = vector.broadcast %cst_20 : f32 to vector<2x128xf32>
    %51 = arith.addf %50, %49 : vector<2x128xf32>
    %52 = arith.divf %50, %51 : vector<2x128xf32>
    %53 = arith.mulf %52, %20 : vector<2x128xf32>
    %54 = arith.addf %53, %23 : vector<2x128xf32>
    %55 = vector.extract_strided_slice %54 {offsets = [0, 0], sizes = [2, 32], strides = [1, 1]} : vector<2x128xf32> to vector<2x32xf32>
    %56 = vector.extract_strided_slice %54 {offsets = [0, 32], sizes = [2, 32], strides = [1, 1]} : vector<2x128xf32> to vector<2x32xf32>
    %57 = vector.extract_strided_slice %54 {offsets = [0, 64], sizes = [2, 32], strides = [1, 1]} : vector<2x128xf32> to vector<2x32xf32>
    %58 = vector.extract_strided_slice %54 {offsets = [0, 96], sizes = [2, 32], strides = [1, 1]} : vector<2x128xf32> to vector<2x32xf32>
    %59 = arith.mulf %56, %42 : vector<2x32xf32>
    %60 = arith.mulf %55, %57 : vector<2x32xf32>
    %61 = arith.addf %59, %60 : vector<2x32xf32>
    %62 = math.tanh %61 : vector<2x32xf32>
    %63 = arith.mulf %58, %62 : vector<2x32xf32>
    %64 = vector.extract_strided_slice %10 {offsets = [4, 0], sizes = [2, 128], strides = [1, 1]} : vector<16x128xf32> to vector<2x128xf32>
    %cst_21 = arith.constant dense<0.000000e+00> : vector<2x128xf32>
    %65 = tpu.matmul %63, %11, %cst_21 {dimension_numbers = #tpu.dot_dimension_numbers<[1], [0], [0], [1], [0, 0, 1, 1], [], []>} : vector<2x32xf32>, vector<32x128xf32>, vector<2x128xf32> -> vector<2x128xf32>
    %66 = arith.addf %64, %65 : vector<2x128xf32>
    %67 = arith.negf %66 : vector<2x128xf32>
    %68 = math.exp %67 : vector<2x128xf32>
    %cst_22 = arith.constant 1.000000e+00 : f32
    %69 = vector.broadcast %cst_22 : f32 to vector<2x128xf32>
    %70 = arith.addf %69, %68 : vector<2x128xf32>
    %71 = arith.divf %69, %70 : vector<2x128xf32>
    %72 = arith.mulf %71, %20 : vector<2x128xf32>
    %73 = arith.addf %72, %23 : vector<2x128xf32>
    %74 = vector.extract_strided_slice %73 {offsets = [0, 0], sizes = [2, 32], strides = [1, 1]} : vector<2x128xf32> to vector<2x32xf32>
    %75 = vector.extract_strided_slice %73 {offsets = [0, 32], sizes = [2, 32], strides = [1, 1]} : vector<2x128xf32> to vector<2x32xf32>
    %76 = vector.extract_strided_slice %73 {offsets = [0, 64], sizes = [2, 32], strides = [1, 1]} : vector<2x128xf32> to vector<2x32xf32>
    %77 = vector.extract_strided_slice %73 {offsets = [0, 96], sizes = [2, 32], strides = [1, 1]} : vector<2x128xf32> to vector<2x32xf32>
    %78 = arith.mulf %75, %61 : vector<2x32xf32>
    %79 = arith.mulf %74, %76 : vector<2x32xf32>
    %80 = arith.addf %78, %79 : vector<2x32xf32>
    %81 = math.tanh %80 : vector<2x32xf32>
    %82 = arith.mulf %77, %81 : vector<2x32xf32>
    %83 = vector.extract_strided_slice %10 {offsets = [6, 0], sizes = [2, 128], strides = [1, 1]} : vector<16x128xf32> to vector<2x128xf32>
    %cst_23 = arith.constant dense<0.000000e+00> : vector<2x128xf32>
    %84 = tpu.matmul %82, %11, %cst_23 {dimension_numbers = #tpu.dot_dimension_numbers<[1], [0], [0], [1], [0, 0, 1, 1], [], []>} : vector<2x32xf32>, vector<32x128xf32>, vector<2x128xf32> -> vector<2x128xf32>
    %85 = arith.addf %83, %84 : vector<2x128xf32>
    %86 = arith.negf %85 : vector<2x128xf32>
    %87 = math.exp %86 : vector<2x128xf32>
    %cst_24 = arith.constant 1.000000e+00 : f32
    %88 = vector.broadcast %cst_24 : f32 to vector<2x128xf32>
    %89 = arith.addf %88, %87 : vector<2x128xf32>
    %90 = arith.divf %88, %89 : vector<2x128xf32>
    %91 = arith.mulf %90, %20 : vector<2x128xf32>
    %92 = arith.addf %91, %23 : vector<2x128xf32>
    %93 = vector.extract_strided_slice %92 {offsets = [0, 0], sizes = [2, 32], strides = [1, 1]} : vector<2x128xf32> to vector<2x32xf32>
    %94 = vector.extract_strided_slice %92 {offsets = [0, 32], sizes = [2, 32], strides = [1, 1]} : vector<2x128xf32> to vector<2x32xf32>
    %95 = vector.extract_strided_slice %92 {offsets = [0, 64], sizes = [2, 32], strides = [1, 1]} : vector<2x128xf32> to vector<2x32xf32>
    %96 = vector.extract_strided_slice %92 {offsets = [0, 96], sizes = [2, 32], strides = [1, 1]} : vector<2x128xf32> to vector<2x32xf32>
    %97 = arith.mulf %94, %80 : vector<2x32xf32>
    %98 = arith.mulf %93, %95 : vector<2x32xf32>
    %99 = arith.addf %97, %98 : vector<2x32xf32>
    %100 = math.tanh %99 : vector<2x32xf32>
    %101 = arith.mulf %96, %100 : vector<2x32xf32>
    %102 = vector.extract_strided_slice %10 {offsets = [8, 0], sizes = [2, 128], strides = [1, 1]} : vector<16x128xf32> to vector<2x128xf32>
    %cst_25 = arith.constant dense<0.000000e+00> : vector<2x128xf32>
    %103 = tpu.matmul %101, %11, %cst_25 {dimension_numbers = #tpu.dot_dimension_numbers<[1], [0], [0], [1], [0, 0, 1, 1], [], []>} : vector<2x32xf32>, vector<32x128xf32>, vector<2x128xf32> -> vector<2x128xf32>
    %104 = arith.addf %102, %103 : vector<2x128xf32>
    %105 = arith.negf %104 : vector<2x128xf32>
    %106 = math.exp %105 : vector<2x128xf32>
    %cst_26 = arith.constant 1.000000e+00 : f32
    %107 = vector.broadcast %cst_26 : f32 to vector<2x128xf32>
    %108 = arith.addf %107, %106 : vector<2x128xf32>
    %109 = arith.divf %107, %108 : vector<2x128xf32>
    %110 = arith.mulf %109, %20 : vector<2x128xf32>
    %111 = arith.addf %110, %23 : vector<2x128xf32>
    %112 = vector.extract_strided_slice %111 {offsets = [0, 0], sizes = [2, 32], strides = [1, 1]} : vector<2x128xf32> to vector<2x32xf32>
    %113 = vector.extract_strided_slice %111 {offsets = [0, 32], sizes = [2, 32], strides = [1, 1]} : vector<2x128xf32> to vector<2x32xf32>
    %114 = vector.extract_strided_slice %111 {offsets = [0, 64], sizes = [2, 32], strides = [1, 1]} : vector<2x128xf32> to vector<2x32xf32>
    %115 = vector.extract_strided_slice %111 {offsets = [0, 96], sizes = [2, 32], strides = [1, 1]} : vector<2x128xf32> to vector<2x32xf32>
    %116 = arith.mulf %113, %99 : vector<2x32xf32>
    %117 = arith.mulf %112, %114 : vector<2x32xf32>
    %118 = arith.addf %116, %117 : vector<2x32xf32>
    %119 = math.tanh %118 : vector<2x32xf32>
    %120 = arith.mulf %115, %119 : vector<2x32xf32>
    %121 = vector.extract_strided_slice %10 {offsets = [10, 0], sizes = [2, 128], strides = [1, 1]} : vector<16x128xf32> to vector<2x128xf32>
    %cst_27 = arith.constant dense<0.000000e+00> : vector<2x128xf32>
    %122 = tpu.matmul %120, %11, %cst_27 {dimension_numbers = #tpu.dot_dimension_numbers<[1], [0], [0], [1], [0, 0, 1, 1], [], []>} : vector<2x32xf32>, vector<32x128xf32>, vector<2x128xf32> -> vector<2x128xf32>
    %123 = arith.addf %121, %122 : vector<2x128xf32>
    %124 = arith.negf %123 : vector<2x128xf32>
    %125 = math.exp %124 : vector<2x128xf32>
    %cst_28 = arith.constant 1.000000e+00 : f32
    %126 = vector.broadcast %cst_28 : f32 to vector<2x128xf32>
    %127 = arith.addf %126, %125 : vector<2x128xf32>
    %128 = arith.divf %126, %127 : vector<2x128xf32>
    %129 = arith.mulf %128, %20 : vector<2x128xf32>
    %130 = arith.addf %129, %23 : vector<2x128xf32>
    %131 = vector.extract_strided_slice %130 {offsets = [0, 0], sizes = [2, 32], strides = [1, 1]} : vector<2x128xf32> to vector<2x32xf32>
    %132 = vector.extract_strided_slice %130 {offsets = [0, 32], sizes = [2, 32], strides = [1, 1]} : vector<2x128xf32> to vector<2x32xf32>
    %133 = vector.extract_strided_slice %130 {offsets = [0, 64], sizes = [2, 32], strides = [1, 1]} : vector<2x128xf32> to vector<2x32xf32>
    %134 = vector.extract_strided_slice %130 {offsets = [0, 96], sizes = [2, 32], strides = [1, 1]} : vector<2x128xf32> to vector<2x32xf32>
    %135 = arith.mulf %132, %118 : vector<2x32xf32>
    %136 = arith.mulf %131, %133 : vector<2x32xf32>
    %137 = arith.addf %135, %136 : vector<2x32xf32>
    %138 = math.tanh %137 : vector<2x32xf32>
    %139 = arith.mulf %134, %138 : vector<2x32xf32>
    %140 = vector.extract_strided_slice %10 {offsets = [12, 0], sizes = [2, 128], strides = [1, 1]} : vector<16x128xf32> to vector<2x128xf32>
    %cst_29 = arith.constant dense<0.000000e+00> : vector<2x128xf32>
    %141 = tpu.matmul %139, %11, %cst_29 {dimension_numbers = #tpu.dot_dimension_numbers<[1], [0], [0], [1], [0, 0, 1, 1], [], []>} : vector<2x32xf32>, vector<32x128xf32>, vector<2x128xf32> -> vector<2x128xf32>
    %142 = arith.addf %140, %141 : vector<2x128xf32>
    %143 = arith.negf %142 : vector<2x128xf32>
    %144 = math.exp %143 : vector<2x128xf32>
    %cst_30 = arith.constant 1.000000e+00 : f32
    %145 = vector.broadcast %cst_30 : f32 to vector<2x128xf32>
    %146 = arith.addf %145, %144 : vector<2x128xf32>
    %147 = arith.divf %145, %146 : vector<2x128xf32>
    %148 = arith.mulf %147, %20 : vector<2x128xf32>
    %149 = arith.addf %148, %23 : vector<2x128xf32>
    %150 = vector.extract_strided_slice %149 {offsets = [0, 0], sizes = [2, 32], strides = [1, 1]} : vector<2x128xf32> to vector<2x32xf32>
    %151 = vector.extract_strided_slice %149 {offsets = [0, 32], sizes = [2, 32], strides = [1, 1]} : vector<2x128xf32> to vector<2x32xf32>
    %152 = vector.extract_strided_slice %149 {offsets = [0, 64], sizes = [2, 32], strides = [1, 1]} : vector<2x128xf32> to vector<2x32xf32>
    %153 = vector.extract_strided_slice %149 {offsets = [0, 96], sizes = [2, 32], strides = [1, 1]} : vector<2x128xf32> to vector<2x32xf32>
    %154 = arith.mulf %151, %137 : vector<2x32xf32>
    %155 = arith.mulf %150, %152 : vector<2x32xf32>
    %156 = arith.addf %154, %155 : vector<2x32xf32>
    %157 = math.tanh %156 : vector<2x32xf32>
    %158 = arith.mulf %153, %157 : vector<2x32xf32>
    %159 = vector.extract_strided_slice %10 {offsets = [14, 0], sizes = [2, 128], strides = [1, 1]} : vector<16x128xf32> to vector<2x128xf32>
    %cst_31 = arith.constant dense<0.000000e+00> : vector<2x128xf32>
    %160 = tpu.matmul %158, %11, %cst_31 {dimension_numbers = #tpu.dot_dimension_numbers<[1], [0], [0], [1], [0, 0, 1, 1], [], []>} : vector<2x32xf32>, vector<32x128xf32>, vector<2x128xf32> -> vector<2x128xf32>
    %161 = arith.addf %159, %160 : vector<2x128xf32>
    %162 = arith.negf %161 : vector<2x128xf32>
    %163 = math.exp %162 : vector<2x128xf32>
    %cst_32 = arith.constant 1.000000e+00 : f32
    %164 = vector.broadcast %cst_32 : f32 to vector<2x128xf32>
    %165 = arith.addf %164, %163 : vector<2x128xf32>
    %166 = arith.divf %164, %165 : vector<2x128xf32>
    %167 = arith.mulf %166, %20 : vector<2x128xf32>
    %168 = arith.addf %167, %23 : vector<2x128xf32>
    %169 = vector.extract_strided_slice %168 {offsets = [0, 0], sizes = [2, 32], strides = [1, 1]} : vector<2x128xf32> to vector<2x32xf32>
    %170 = vector.extract_strided_slice %168 {offsets = [0, 32], sizes = [2, 32], strides = [1, 1]} : vector<2x128xf32> to vector<2x32xf32>
    %171 = vector.extract_strided_slice %168 {offsets = [0, 64], sizes = [2, 32], strides = [1, 1]} : vector<2x128xf32> to vector<2x32xf32>
    %172 = vector.extract_strided_slice %168 {offsets = [0, 96], sizes = [2, 32], strides = [1, 1]} : vector<2x128xf32> to vector<2x32xf32>
    %173 = arith.mulf %170, %156 : vector<2x32xf32>
    %174 = arith.mulf %169, %171 : vector<2x32xf32>
    %175 = arith.addf %173, %174 : vector<2x32xf32>
    %176 = math.tanh %175 : vector<2x32xf32>
    %177 = arith.mulf %172, %176 : vector<2x32xf32>
    %c0_33 = arith.constant 0 : index
    %c0_34 = arith.constant 0 : index
    %178 = vector.load %arg12[%c0_33, %c0_34] : memref<2x32xf32, #tpu.memory_space<vmem>>, vector<2x32xf32>
    tpu.vector_store %arg12[%c0_33, %c0_34], %177 {strides = array<i32>} : memref<2x32xf32, #tpu.memory_space<vmem>>, vector<2x32xf32>,
    %c0_35 = arith.constant 0 : index
    %c0_36 = arith.constant 0 : index
    %179 = vector.load %arg13[%c0_35, %c0_36] : memref<2x32xf32, #tpu.memory_space<vmem>>, vector<2x32xf32>
    tpu.vector_store %arg13[%c0_35, %c0_36], %175 {strides = array<i32>} : memref<2x32xf32, #tpu.memory_space<vmem>>, vector<2x32xf32>,
    %180 = tpu.concatenate %44, %63, %82, %101, %120, %139, %158, %177 in 0 : vector<2x32xf32>, vector<2x32xf32>, vector<2x32xf32>, vector<2x32xf32>, vector<2x32xf32>, vector<2x32xf32>, vector<2x32xf32>, vector<2x32xf32> -> vector<16x32xf32>
    %c0_37 = arith.constant 0 : index
    %c0_38 = arith.constant 0 : index
    %181 = vector.load %arg7[%c0_37, %c0_38] : memref<32x128xf32, #tpu.memory_space<vmem>>, vector<32x128xf32>
    %cst_39 = arith.constant dense<0.000000e+00> : vector<16x128xf32>
    %182 = tpu.matmul %180, %181, %cst_39 {dimension_numbers = #tpu.dot_dimension_numbers<[1], [0], [0], [1], [0, 0, 1, 1], [], []>} : vector<16x32xf32>, vector<32x128xf32>, vector<16x128xf32> -> vector<16x128xf32>
    %c0_40 = arith.constant 0 : index
    %c0_41 = arith.constant 0 : index
    %183 = vector.load %arg8[%c0_40, %c0_41] : memref<1x128xf32, #tpu.memory_space<vmem>>, vector<1x128xf32>
    %184 = vector.broadcast %183 : vector<1x128xf32> to vector<16x128xf32>
    %185 = arith.addf %182, %184 : vector<16x128xf32>
    %c0_42 = arith.constant 0 : index
    %c0_43 = arith.constant 0 : index
    %186 = vector.load %arg9[%c0_42, %c0_43] : memref<16x128xf32, #tpu.memory_space<vmem>>, vector<16x128xf32>
    tpu.vector_store %arg9[%c0_42, %c0_43], %185 {strides = array<i32>} : memref<16x128xf32, #tpu.memory_space<vmem>>, vector<16x128xf32>,
    %c0_i32_44 = arith.constant 0 : i32
    %187 = arith.cmpi eq, %arg0, %c0_i32_44 : i32
    %188 = arith.extui %187 : i1 to i32
    %c0_i32_45 = arith.constant 0 : i32
    %189 = arith.cmpi ne, %188, %c0_i32_45 : i32
    scf.if %189 {
      %c0_46 = arith.constant 0 : index
      %c0_47 = arith.constant 0 : index
      %190 = vector.load %arg10[%c0_46, %c0_47] : memref<2x32xf32, #tpu.memory_space<vmem>>, vector<2x32xf32>
      tpu.vector_store %arg10[%c0_46, %c0_47], %177 {strides = array<i32>} : memref<2x32xf32, #tpu.memory_space<vmem>>, vector<2x32xf32>,
      %c0_48 = arith.constant 0 : index
      %c0_49 = arith.constant 0 : index
      %191 = vector.load %arg11[%c0_48, %c0_49] : memref<2x32xf32, #tpu.memory_space<vmem>>, vector<2x32xf32>
      tpu.vector_store %arg11[%c0_48, %c0_49], %175 {strides = array<i32>} : memref<2x32xf32, #tpu.memory_space<vmem>>, vector<2x32xf32>,
    } else {
    }
    return
  }
  func.func @transform_0(%arg0: i32) -> (i32, i32) {
    %c0_i32 = arith.constant 0 : i32
    %c0_i32_0 = arith.constant 0 : i32
    return %arg0, %c0_i32 : i32, i32
  }
  func.func @transform_1(%arg0: i32) -> (i32, i32) {
    %c0_i32 = arith.constant 0 : i32
    %c0_i32_0 = arith.constant 0 : i32
    %c0_i32_1 = arith.constant 0 : i32
    return %c0_i32, %c0_i32_0 : i32, i32
  }
  func.func @transform_2(%arg0: i32) -> (i32, i32) {
    %c0_i32 = arith.constant 0 : i32
    %c0_i32_0 = arith.constant 0 : i32
    %c0_i32_1 = arith.constant 0 : i32
    return %c0_i32, %c0_i32_0 : i32, i32
  }
  func.func @transform_3(%arg0: i32) -> (i32, i32) {
    %c0_i32 = arith.constant 0 : i32
    %c0_i32_0 = arith.constant 0 : i32
    %c0_i32_1 = arith.constant 0 : i32
    return %c0_i32, %c0_i32_0 : i32, i32
  }
  func.func @transform_4(%arg0: i32) -> (i32, i32) {
    %c0_i32 = arith.constant 0 : i32
    %c0_i32_0 = arith.constant 0 : i32
    %c0_i32_1 = arith.constant 0 : i32
    return %c0_i32, %c0_i32_0 : i32, i32
  }
  func.func @transform_5(%arg0: i32) -> (i32, i32) {
    %c0_i32 = arith.constant 0 : i32
    %c0_i32_0 = arith.constant 0 : i32
    %c0_i32_1 = arith.constant 0 : i32
    return %c0_i32, %c0_i32_0 : i32, i32
  }
  func.func @transform_6(%arg0: i32) -> (i32, i32) {
    %c0_i32 = arith.constant 0 : i32
    %c0_i32_0 = arith.constant 0 : i32
    %c0_i32_1 = arith.constant 0 : i32
    return %c0_i32, %c0_i32_0 : i32, i32
  }
  func.func @transform_7(%arg0: i32) -> (i32, i32) {
    %c0_i32 = arith.constant 0 : i32
    %c0_i32_0 = arith.constant 0 : i32
    %c0_i32_1 = arith.constant 0 : i32
    return %c0_i32, %c0_i32_0 : i32, i32
  }
  func.func @transform_8(%arg0: i32) -> (i32, i32) {
    %c0_i32 = arith.constant 0 : i32
    %c0_i32_0 = arith.constant 0 : i32
    return %arg0, %c0_i32 : i32, i32
  }
  func.func @transform_9(%arg0: i32) -> (i32, i32) {
    %c0_i32 = arith.constant 0 : i32
    %c0_i32_0 = arith.constant 0 : i32
    %c0_i32_1 = arith.constant 0 : i32
    return %c0_i32, %c0_i32_0 : i32, i32
  }
  func.func @transform_10(%arg0: i32) -> (i32, i32) {
    %c0_i32 = arith.constant 0 : i32
    %c0_i32_0 = arith.constant 0 : i32
    %c0_i32_1 = arith.constant 0 : i32
    return %c0_i32, %c0_i32_0 : i32, i32
  }
}

</mosaic_0001>

<llo_original>
// kernel: tpu_custom_call.1
$region0: #{tpu_custom_call.1}
  #allocation0 [shape = 'u32[]', space=smem, size = 0x4, offset = 0x4, fixed_abs, tag = 'smem constant byte address 0x4 - core index']
  #allocation1 [shape = 'u32[144,128]{1,0:T(1,128)}', space=vmem, size = 0x12000, scoped, tag = 'internal scratch']
  #allocation2 [shape = 'f32[2,32]{1,0:T(2,128)}', space=vmem, size = 0x400, scoped, tag = 'scratch operand']
  #allocation3 [shape = 'f32[2,32]{1,0:T(2,128)}', space=vmem, size = 0x400, scoped, tag = 'scratch operand']
  %s0 = inlined_call_operand.hbm [shape: f32[16,32], index: 0, kind: input, shape index: {}]
  %s1 = inlined_call_operand.vmem [shape: f32[2,32], index: 1, kind: input, shape index: {}]
  %s2 = inlined_call_operand.vmem [shape: f32[2,32], index: 2, kind: input, shape index: {}]
  %s3 = inlined_call_operand.hbm [shape: f32[32,128], index: 3, kind: input, shape index: {}]
  %s4 = inlined_call_operand.hbm [shape: f32[32,128], index: 4, kind: input, shape index: {}]
  %s5 = inlined_call_operand.vmem [shape: f32[1,128], index: 5, kind: input, shape index: {}]
  %s6 = inlined_call_operand.hbm [shape: f32[32,128], index: 6, kind: input, shape index: {}]
  %s7 = inlined_call_operand.vmem [shape: f32[1,128], index: 7, kind: input, shape index: {}]
  %s8 = inlined_call_operand.hbm [shape: f32[16,128], index: 8, kind: output, shape index: {0}]
  %s9 = inlined_call_operand.hbm [shape: f32[2,32], index: 9, kind: output, shape index: {1}]
  %s10 = inlined_call_operand.hbm [shape: f32[2,32], index: 10, kind: output, shape index: {2}]
  %11 = xla_tuple %s8, %s9, %s10
  %s12 = sld [smem:[#allocation0]]
  $region82: #{tpu_custom_call.1} parent=0
    _
  %s14 = ssub.s32 1, %s12
  %s15 = scalar_select 0, %s14, %s12
  $region1: #{tpu_custom_call.1} parent=0
    #allocation4 [shape = 'u8[8192]{0}', space=vmem, size = 0x2000, scoped, tag = 'input window, operand 0, single buffered']
    #allocation5 [shape = 's32[1]{0}', space=sflag, size = 0x4, scoped, tag = 'scoped memory for tpu_custom_call.1']
    #allocation6 [shape = 's32[1]{0}', space=sflag, size = 0x4, scoped, tag = 'scoped memory for tpu_custom_call.1']
    #allocation7 [shape = 'u8[16384]{0}', space=vmem, size = 0x4000, scoped, tag = 'input window, operand 3, single buffered']
    #allocation8 [shape = 's32[1]{0}', space=sflag, size = 0x4, scoped, tag = 'scoped memory for tpu_custom_call.1']
    #allocation9 [shape = 'u8[16384]{0}', space=vmem, size = 0x4000, scoped, tag = 'input window, operand 4, single buffered']
    #allocation10 [shape = 'u8[16384]{0}', space=vmem, size = 0x4000, scoped, tag = 'input window, operand 6, single buffered']
    #allocation11 [shape = 's32[1]{0}', space=sflag, size = 0x4, scoped, tag = 'scoped memory for tpu_custom_call.1']
    #allocation12 [shape = 'u8[8192]{0}', space=vmem, size = 0x2000, scoped, tag = 'output window, operand 0, single buffered']
    #allocation13 [shape = 'u8[1024]{0}', space=vmem, size = 0x400, scoped, tag = 'output window, operand 1, single buffered']
    #allocation14 [shape = 's32[1]{0}', space=sflag, size = 0x4, scoped, tag = 'scoped memory for tpu_custom_call.1']
    #allocation15 [shape = 'u8[1024]{0}', space=vmem, size = 0x400, scoped, tag = 'output window, operand 2, single buffered']
    %16 = vsyncpa [#allocation5], 0
    %17 = vsyncpa [#allocation8], 0
    %18 = vsyncpa [#allocation11], 0
    %19 = vsyncpa [#allocation6], 0
    %20 = vsyncpa [#allocation14], 0
    // Predicated region
    $region2: #{tpu_custom_call.1} parent=1 // pred_check
      _
    $region3: #{tpu_custom_call.1} parent=1 // pred_check_branch
      %22 = sbr.rel (0) target = $region5
    $region4: #{tpu_custom_call.1} parent=1 // pred_region
      %s24 = ssub.s32 256, 256
      %25 = vsyncadd [#allocation5], %s24
      %s26 = sshll.u32 [#allocation4], 4
      %s27 = int_to_ptr.vmem [resolvable:$true] %s26
      %32 = dma.hbm_to_vmem [thread:$0]  %s0, 256, %s27, [#allocation5], 128, 128, 8
    $region5: #{tpu_custom_call.1} parent=1 // pred_fallthru
      _
    // Predicated region
    $region6: #{tpu_custom_call.1} parent=1 // pred_check
      _
    $region7: #{tpu_custom_call.1} parent=1 // pred_check_branch
      %34 = sbr.rel (0) target = $region9
    $region8: #{tpu_custom_call.1} parent=1 // pred_region
      _
    $region9: #{tpu_custom_call.1} parent=1 // pred_fallthru
      _
    // Predicated region
    $region10: #{tpu_custom_call.1} parent=1 // pred_check
      _
    $region11: #{tpu_custom_call.1} parent=1 // pred_check_branch
      %36 = sbr.rel (0) target = $region13
    $region12: #{tpu_custom_call.1} parent=1 // pred_region
      _
    $region13: #{tpu_custom_call.1} parent=1 // pred_fallthru
      _
    // Predicated region
    $region14: #{tpu_custom_call.1} parent=1 // pred_check
      _
    $region15: #{tpu_custom_call.1} parent=1 // pred_check_branch
      %38 = sbr.rel (0) target = $region17
    $region16: #{tpu_custom_call.1} parent=1 // pred_region
      %s40 = ssub.s32 512, 512
      %41 = vsyncadd [#allocation8], %s40
      %s42 = sshll.u32 [#allocation7], 4
      %s43 = int_to_ptr.vmem [resolvable:$true] %s42
      %48 = dma.hbm_to_vmem [thread:$0]  %s3, 512, %s43, [#allocation8], 128, 128, 8
    $region17: #{tpu_custom_call.1} parent=1 // pred_fallthru
      _
    // Predicated region
    $region18: #{tpu_custom_call.1} parent=1 // pred_check
      _
    $region19: #{tpu_custom_call.1} parent=1 // pred_check_branch
      %50 = sbr.rel (0) target = $region21
    $region20: #{tpu_custom_call.1} parent=1 // pred_region
      %s52 = ssub.s32 512, 512
      %53 = vsyncadd [#allocation8], %s52
      %s54 = sshll.u32 [#allocation9], 4
      %s55 = int_to_ptr.vmem [resolvable:$true] %s54
      %60 = dma.hbm_to_vmem [thread:$0]  %s4, 512, %s55, [#allocation8], 128, 128, 8
    $region21: #{tpu_custom_call.1} parent=1 // pred_fallthru
      _
    // Predicated region
    $region22: #{tpu_custom_call.1} parent=1 // pred_check
      _
    $region23: #{tpu_custom_call.1} parent=1 // pred_check_branch
      %62 = sbr.rel (0) target = $region25
    $region24: #{tpu_custom_call.1} parent=1 // pred_region
      _
    $region25: #{tpu_custom_call.1} parent=1 // pred_fallthru
      _
    // Predicated region
    $region26: #{tpu_custom_call.1} parent=1 // pred_check
      _
    $region27: #{tpu_custom_call.1} parent=1 // pred_check_branch
      %64 = sbr.rel (0) target = $region29
    $region28: #{tpu_custom_call.1} parent=1 // pred_region
      %s66 = ssub.s32 512, 512
      %67 = vsyncadd [#allocation11], %s66
      %s68 = sshll.u32 [#allocation10], 4
      %s69 = int_to_ptr.vmem [resolvable:$true] %s68
      %74 = dma.hbm_to_vmem [thread:$0]  %s6, 512, %s69, [#allocation11], 128, 128, 8
    $region29: #{tpu_custom_call.1} parent=1 // pred_fallthru
      _
    // Predicated region
    $region30: #{tpu_custom_call.1} parent=1 // pred_check
      _
    $region31: #{tpu_custom_call.1} parent=1 // pred_check_branch
      %76 = sbr.rel (0) target = $region33
    $region32: #{tpu_custom_call.1} parent=1 // pred_region
      _
    $region33: #{tpu_custom_call.1} parent=1 // pred_fallthru
      _
    // Predicated region
    $region34: #{tpu_custom_call.1} parent=1 // pred_check
      _
    $region35: #{tpu_custom_call.1} parent=1 // pred_check_branch
      %78 = sbr.rel (0) target = $region37
    $region36: #{tpu_custom_call.1} parent=1 // pred_region
      %79 = dma.done [#allocation5], 256
    $region37: #{tpu_custom_call.1} parent=1 // pred_fallthru
      _
    // Predicated region
    $region38: #{tpu_custom_call.1} parent=1 // pred_check
      _
    $region39: #{tpu_custom_call.1} parent=1 // pred_check_branch
      %81 = sbr.rel (0) target = $region41
    $region40: #{tpu_custom_call.1} parent=1 // pred_region
      %82 = dma.done [#allocation8], 512
    $region41: #{tpu_custom_call.1} parent=1 // pred_fallthru
      _
    // Predicated region
    $region42: #{tpu_custom_call.1} parent=1 // pred_check
      _
    $region43: #{tpu_custom_call.1} parent=1 // pred_check_branch
      %84 = sbr.rel (0) target = $region45
    $region44: #{tpu_custom_call.1} parent=1 // pred_region
      %85 = dma.done [#allocation8], 512
    $region45: #{tpu_custom_call.1} parent=1 // pred_fallthru
      _
    // Predicated region
    $region46: #{tpu_custom_call.1} parent=1 // pred_check
      _
    $region47: #{tpu_custom_call.1} parent=1 // pred_check_branch
      %87 = sbr.rel (0) target = $region49
    $region48: #{tpu_custom_call.1} parent=1 // pred_region
      %88 = dma.done [#allocation11], 512
    $region49: #{tpu_custom_call.1} parent=1 // pred_fallthru
      _
    %p89 = scmp.eq.s32.totalorder 0, 0
    // Predicated region
    $region50: #{tpu_custom_call.1} parent=1 // pred_check
      %p90 = pneg %p89
    $region51: #{tpu_custom_call.1} parent=1 // pred_check_branch
      %92 = sbr.rel (%p90) target = $region53
    $region52: #{tpu_custom_call.1} parent=1 // pred_region
      %v93 = vld [vmem:[%s1] sm:$0x3]
      %vm94 = vcmask 254976
      %95 = vst.msk [vmem:[#allocation2] sm:$0x3] %vm94, %v93
      %v96 = vld [vmem:[%s2] sm:$0x3]
      %97 = vst.msk [vmem:[#allocation3] sm:$0x3] %vm94, %v96
    $region53: #{tpu_custom_call.1} parent=1 // pred_fallthru
      _
    %v98 = vld [vmem:[#allocation4] sm:$0xff]
    %v99 = vld [vmem:[#allocation4 + $0x8] sm:$0xff]
    %v100 = vmax.f32 %v98, 0.0
    %v101 = vmax.f32 %v99, 0.0
    %v102 = vld [vmem:[#allocation7] sm:$0xff]
    %v103 = vld [vmem:[#allocation7 + $0x8] sm:$0xff]
    %v104 = vld [vmem:[#allocation7 + $0x10] sm:$0xff]
    %v105 = vld [vmem:[#allocation7 + $0x18] sm:$0xff]
    %v106 = vld [vmem:[%s5] sm:$0x1]
    %v108 = vlaneseq
    %v109 = vshrl.u32 %v108, 7
    %v110 = vsub.s32 0, %v109
    %v111 = vrot.slane %v106, %v110
    %vm113 = vcmask 261120
    %v115 = vsel %vm113, %v100, 0
    %v118 = vsel %vm113, %v101, 0
    %120 = vmatprep.subr.mxu0 0.0
    %121 = vmatpush1.msra.mxu0 %v102
    %122 = vmatprep.subr.mxu0 0.0
    %123 = vmatpush1.msra.mxu0 %v103
    %124 = vmatprep.subr.mxu0 0.0
    %125 = vmatpush1.msra.mxu0 %v104
    %126 = vmatprep.subr.mxu0 0.0
    %127 = vmatpush1.msra.mxu0 %v105
    %128 = vmatprep.subr.mxu0 0.0
    %129 = vmatpush1.msra.mxu0 0.0
    %130 = vmatprep.subr.mxu0 0.0
    %131 = vmatpush1.msra.mxu0 0.0
    %132 = vmatprep.subr.mxu0 0.0
    %133 = vmatpush1.msra.mxu0 0.0
    %134 = vmatprep.subr.mxu0 0.0
    %135 = vmatpush1.msra.mxu0 0.0
    %136 = vmatprep.subr.mxu0 0.0
    %137 = vmatpush1.msra.mxu0 0.0
    %138 = vmatprep.subr.mxu0 0.0
    %139 = vmatpush1.msra.mxu0 0.0
    %140 = vmatprep.subr.mxu0 0.0
    %141 = vmatpush1.msra.mxu0 0.0
    %142 = vmatprep.subr.mxu0 0.0
    %143 = vmatpush1.msra.mxu0 0.0
    %144 = vmatprep.subr.mxu0 0.0
    %145 = vmatpush1.msra.mxu0 0.0
    %146 = vmatprep.subr.mxu0 0.0
    %147 = vmatpush1.msra.mxu0 0.0
    %148 = vmatprep.subr.mxu0 0.0
    %149 = vmatpush1.msra.mxu0 0.0
    %150 = vmatprep.subr.mxu0 0.0
    %151 = vmatpush1.msra.mxu0 0.0
    %152 = vmatprep.subr.mxu0 0.0
    %153 = vmatpush1.msra.mxu0 0.0
    %154 = vmatprep.subr.mxu0 0.0
    %155 = vmatpush1.msra.mxu0 0.0
    %156 = vmatprep.subr.mxu0 0.0
    %157 = vmatpush1.msra.mxu0 0.0
    %158 = vmatprep.subr.mxu0 0.0
    %159 = vmatpush1.msra.mxu0 0.0
    %160 = vmatprep.subr.mxu0 0.0
    %161 = vmatpush1.msra.mxu0 0.0
    %162 = vmatprep.subr.mxu0 0.0
    %163 = vmatpush1.msra.mxu0 0.0
    %164 = vmatprep.subr.mxu0 0.0
    %165 = vmatpush1.msra.mxu0 0.0
    %166 = vmatprep.subr.mxu0 0.0
    %167 = vmatpush1.msra.mxu0 0.0
    %168 = vmatprep.subr.mxu0 0.0
    %169 = vmatpush1.msra.mxu0 0.0
    %170 = vmatprep.subr.mxu0 0.0
    %171 = vmatpush1.msra.mxu0 0.0
    %172 = vmatprep.subr.mxu0 0.0
    %173 = vmatpush1.msra.mxu0 0.0
    %174 = vmatprep.subr.mxu0 0.0
    %175 = vmatpush1.msra.mxu0 0.0
    %176 = vmatprep.subr.mxu0 0.0
    %177 = vmatpush1.msra.mxu0 0.0
    %178 = vmatprep.subr.mxu0 0.0
    %179 = vmatpush1.msra.mxu0 0.0
    %180 = vmatprep.subr.mxu0 0.0
    %181 = vmatpush1.msra.mxu0 0.0
    %182 = vmatprep.subr.mxu0 0.0
    %183 = vmatpush1.msra.mxu0 0.0
    %184 = vmatprep.mubr.f32.mxu0 0.0
    %185 = vmatmul.mubr.f32.gmra.mrb[0].mxu0 %v115
    %v186 = vpop.f32.mrb[0].mxu0
    %v187 = vadd.f32 %v111, %v186
    %v188 = vpop.f32.mrb[0].mxu0
    %189 = vmatprep.mubr.f32.mxu0 0.0
    %190 = vmatmul.mubr.f32.gmra.mrb[0].mxu0 %v118
    %v191 = vpop.f32.mrb[0].mxu0
    %v192 = vadd.f32 %v111, %v191
    %v193 = vpop.f32.mrb[0].mxu0
    %194 = vdwg.mxu0
    %v195 = vld [vmem:[#allocation9] sm:$0xff]
    %v196 = vld [vmem:[#allocation9 + $0x8] sm:$0xff]
    %v197 = vld [vmem:[#allocation9 + $0x10] sm:$0xff]
    %v198 = vld [vmem:[#allocation9 + $0x18] sm:$0xff]
    %v199 = vlaneseq
    %v200 = vand.u32 %v199, 127
    %vm201 = vcmp.ge.s32.totalorder %v200, 64
    %vm202 = vcmp.lt.s32.totalorder %v200, 96
    %vm203 = vmand %vm201, %vm202
    %v204 = vsel %vm203, 2.0, 1.0
    %v205 = vsel %vm203, -1.0, 0.0
    %v206 = vld [vmem:[#allocation2] sm:$0x3]
    %v207 = vld [vmem:[#allocation3] sm:$0x3]
    %v209 = vsel %vm113, %v206, 0
    %211 = vmatprep.subr.mxu0 0.0
    %212 = vmatpush1.msra.mxu0 %v195
    %213 = vmatprep.subr.mxu0 0.0
    %214 = vmatpush1.msra.mxu0 %v196
    %215 = vmatprep.subr.mxu0 0.0
    %216 = vmatpush1.msra.mxu0 %v197
    %217 = vmatprep.subr.mxu0 0.0
    %218 = vmatpush1.msra.mxu0 %v198
    %219 = vmatprep.subr.mxu0 0.0
    %220 = vmatpush1.msra.mxu0 0.0
    %221 = vmatprep.subr.mxu0 0.0
    %222 = vmatpush1.msra.mxu0 0.0
    %223 = vmatprep.subr.mxu0 0.0
    %224 = vmatpush1.msra.mxu0 0.0
    %225 = vmatprep.subr.mxu0 0.0
    %226 = vmatpush1.msra.mxu0 0.0
    %227 = vmatprep.subr.mxu0 0.0
    %228 = vmatpush1.msra.mxu0 0.0
    %229 = vmatprep.subr.mxu0 0.0
    %230 = vmatpush1.msra.mxu0 0.0
    %231 = vmatprep.subr.mxu0 0.0
    %232 = vmatpush1.msra.mxu0 0.0
    %233 = vmatprep.subr.mxu0 0.0
    %234 = vmatpush1.msra.mxu0 0.0
    %235 = vmatprep.subr.mxu0 0.0
    %236 = vmatpush1.msra.mxu0 0.0
    %237 = vmatprep.subr.mxu0 0.0
    %238 = vmatpush1.msra.mxu0 0.0
    %239 = vmatprep.subr.mxu0 0.0
    %240 = vmatpush1.msra.mxu0 0.0
    %241 = vmatprep.subr.mxu0 0.0
    %242 = vmatpush1.msra.mxu0 0.0
    %243 = vmatprep.subr.mxu0 0.0
    %244 = vmatpush1.msra.mxu0 0.0
    %245 = vmatprep.subr.mxu0 0.0
    %246 = vmatpush1.msra.mxu0 0.0
    %247 = vmatprep.subr.mxu0 0.0
    %248 = vmatpush1.msra.mxu0 0.0
    %249 = vmatprep.subr.mxu0 0.0
    %250 = vmatpush1.msra.mxu0 0.0
    %251 = vmatprep.subr.mxu0 0.0
    %252 = vmatpush1.msra.mxu0 0.0
    %253 = vmatprep.subr.mxu0 0.0
    %254 = vmatpush1.msra.mxu0 0.0
    %255 = vmatprep.subr.mxu0 0.0
    %256 = vmatpush1.msra.mxu0 0.0
    %257 = vmatprep.subr.mxu0 0.0
    %258 = vmatpush1.msra.mxu0 0.0
    %259 = vmatprep.subr.mxu0 0.0
    %260 = vmatpush1.msra.mxu0 0.0
    %261 = vmatprep.subr.mxu0 0.0
    %262 = vmatpush1.msra.mxu0 0.0
    %263 = vmatprep.subr.mxu0 0.0
    %264 = vmatpush1.msra.mxu0 0.0
    %265 = vmatprep.subr.mxu0 0.0
    %266 = vmatpush1.msra.mxu0 0.0
    %267 = vmatprep.subr.mxu0 0.0
    %268 = vmatpush1.msra.mxu0 0.0
    %269 = vmatprep.subr.mxu0 0.0
    %270 = vmatpush1.msra.mxu0 0.0
    %271 = vmatprep.subr.mxu0 0.0
    %272 = vmatpush1.msra.mxu0 0.0
    %273 = vmatprep.subr.mxu0 0.0
    %274 = vmatpush1.msra.mxu0 0.0
    %275 = vmatprep.mubr.f32.mxu0 0.0
    %276 = vmatmul.mubr.f32.gmra.mrb[0].mxu0 %v209
    %v277 = vpop.f32.mrb[0].mxu0
    %v278 = vadd.f32 0.0, %v277
    %v279 = vpop.f32.mrb[0].mxu0
    %280 = vdwg.mxu0
    %v281 = vadd.f32 %v187, %v278
    %v282 = vxor.u32 %v281, 2147483648
    %v283 = vmul.f32 %v282, 1.442695
    %v284 = vpow.pop %v283
    %v285 = vadd.f32 %v284, 1.0
    %v286 = vrcp.pop %v285
    %v287 = vmul.f32 1.0, %v286
    %v288 = vmul.f32 %v287, %v204
    %v289 = vadd.f32 %v288, %v205
    %291 = vrot.lane.b32.xlu0 %v207, 32
    %v292 = vpop.permute.xlu0 %291
    %v294 = vmul.f32 %v289, %v292
    %296 = vrot.lane.b32.xlu0 %v289, 64
    %v297 = vpop.permute.xlu0 %296
    %v299 = vmul.f32 %v289, %v297
    %301 = vrot.lane.b32.xlu0 %v299, 32
    %v302 = vpop.permute.xlu0 %301
    %v304 = vadd.f32 %v294, %v302
    %v305 = vtanh.pop %v304
    %307 = vrot.lane.b32.xlu0 %v305, 64
    %v308 = vpop.permute.xlu0 %307
    %v310 = vmul.f32 %v289, %v308
    %312 = vrot.lane.b32.xlu0 %v310, 32
    %v313 = vpop.permute.xlu0 %312
    %v314 = vsel %vm113, %v313, 0
    %316 = vmatprep.subr.mxu0 0.0
    %317 = vmatpush1.msra.mxu0 %v195
    %318 = vmatprep.subr.mxu0 0.0
    %319 = vmatpush1.msra.mxu0 %v196
    %320 = vmatprep.subr.mxu0 0.0
    %321 = vmatpush1.msra.mxu0 %v197
    %322 = vmatprep.subr.mxu0 0.0
    %323 = vmatpush1.msra.mxu0 %v198
    %324 = vmatprep.subr.mxu0 0.0
    %325 = vmatpush1.msra.mxu0 0.0
    %326 = vmatprep.subr.mxu0 0.0
    %327 = vmatpush1.msra.mxu0 0.0
    %328 = vmatprep.subr.mxu0 0.0
    %329 = vmatpush1.msra.mxu0 0.0
    %330 = vmatprep.subr.mxu0 0.0
    %331 = vmatpush1.msra.mxu0 0.0
    %332 = vmatprep.subr.mxu0 0.0
    %333 = vmatpush1.msra.mxu0 0.0
    %334 = vmatprep.subr.mxu0 0.0
    %335 = vmatpush1.msra.mxu0 0.0
    %336 = vmatprep.subr.mxu0 0.0
    %337 = vmatpush1.msra.mxu0 0.0
    %338 = vmatprep.subr.mxu0 0.0
    %339 = vmatpush1.msra.mxu0 0.0
    %340 = vmatprep.subr.mxu0 0.0
    %341 = vmatpush1.msra.mxu0 0.0
    %342 = vmatprep.subr.mxu0 0.0
    %343 = vmatpush1.msra.mxu0 0.0
    %344 = vmatprep.subr.mxu0 0.0
    %345 = vmatpush1.msra.mxu0 0.0
    %346 = vmatprep.subr.mxu0 0.0
    %347 = vmatpush1.msra.mxu0 0.0
    %348 = vmatprep.subr.mxu0 0.0
    %349 = vmatpush1.msra.mxu0 0.0
    %350 = vmatprep.subr.mxu0 0.0
    %351 = vmatpush1.msra.mxu0 0.0
    %352 = vmatprep.subr.mxu0 0.0
    %353 = vmatpush1.msra.mxu0 0.0
    %354 = vmatprep.subr.mxu0 0.0
    %355 = vmatpush1.msra.mxu0 0.0
    %356 = vmatprep.subr.mxu0 0.0
    %357 = vmatpush1.msra.mxu0 0.0
    %358 = vmatprep.subr.mxu0 0.0
    %359 = vmatpush1.msra.mxu0 0.0
    %360 = vmatprep.subr.mxu0 0.0
    %361 = vmatpush1.msra.mxu0 0.0
    %362 = vmatprep.subr.mxu0 0.0
    %363 = vmatpush1.msra.mxu0 0.0
    %364 = vmatprep.subr.mxu0 0.0
    %365 = vmatpush1.msra.mxu0 0.0
    %366 = vmatprep.subr.mxu0 0.0
    %367 = vmatpush1.msra.mxu0 0.0
    %368 = vmatprep.subr.mxu0 0.0
    %369 = vmatpush1.msra.mxu0 0.0
    %370 = vmatprep.subr.mxu0 0.0
    %371 = vmatpush1.msra.mxu0 0.0
    %372 = vmatprep.subr.mxu0 0.0
    %373 = vmatpush1.msra.mxu0 0.0
    %374 = vmatprep.subr.mxu0 0.0
    %375 = vmatpush1.msra.mxu0 0.0
    %376 = vmatprep.subr.mxu0 0.0
    %377 = vmatpush1.msra.mxu0 0.0
    %378 = vmatprep.subr.mxu0 0.0
    %379 = vmatpush1.msra.mxu0 0.0
    %380 = vmatprep.mubr.f32.mxu0 0.0
    %381 = vmatmul.mubr.f32.gmra.mrb[0].mxu0 %v314
    %v382 = vpop.f32.mrb[0].mxu0
    %v383 = vadd.f32 0.0, %v382
    %v384 = vpop.f32.mrb[0].mxu0
    %385 = vdwg.mxu0
    %v387 = vrot.slane %v383, 6
    %v389 = vadd.f32 %v187, %v387
    %v390 = vxor.u32 %v389, 2147483648
    %v391 = vmul.f32 %v390, 1.442695
    %v392 = vpow.pop %v391
    %v393 = vadd.f32 %v392, 1.0
    %v394 = vrcp.pop %v393
    %v395 = vmul.f32 1.0, %v394
    %v396 = vmul.f32 %v395, %v204
    %v397 = vadd.f32 %v396, %v205
    %v399 = vrot.slane %v304, 6
    %v401 = vmul.f32 %v397, %v399
    %403 = vrot.lane.b32.xlu0 %v397, 64
    %v404 = vpop.permute.xlu0 %403
    %v406 = vmul.f32 %v397, %v404
    %408 = vrot.lane.b32.xlu0 %v406, 32
    %v409 = vpop.permute.xlu0 %408
    %v411 = vadd.f32 %v401, %v409
    %v412 = vtanh.pop %v411
    %414 = vrot.lane.b32.xlu0 %v412, 64
    %v415 = vpop.permute.xlu0 %414
    %v417 = vmul.f32 %v397, %v415
    %v419 = vrot.slane %v417, 2
    %420 = vrot.lane.b32.xlu0 %v419, 32
    %v421 = vpop.permute.xlu0 %420
    %v422 = vsel %vm113, %v421, 0
    %424 = vmatprep.subr.mxu0 0.0
    %425 = vmatpush1.msra.mxu0 %v195
    %426 = vmatprep.subr.mxu0 0.0
    %427 = vmatpush1.msra.mxu0 %v196
    %428 = vmatprep.subr.mxu0 0.0
    %429 = vmatpush1.msra.mxu0 %v197
    %430 = vmatprep.subr.mxu0 0.0
    %431 = vmatpush1.msra.mxu0 %v198
    %432 = vmatprep.subr.mxu0 0.0
    %433 = vmatpush1.msra.mxu0 0.0
    %434 = vmatprep.subr.mxu0 0.0
    %435 = vmatpush1.msra.mxu0 0.0
    %436 = vmatprep.subr.mxu0 0.0
    %437 = vmatpush1.msra.mxu0 0.0
    %438 = vmatprep.subr.mxu0 0.0
    %439 = vmatpush1.msra.mxu0 0.0
    %440 = vmatprep.subr.mxu0 0.0
    %441 = vmatpush1.msra.mxu0 0.0
    %442 = vmatprep.subr.mxu0 0.0
    %443 = vmatpush1.msra.mxu0 0.0
    %444 = vmatprep.subr.mxu0 0.0
    %445 = vmatpush1.msra.mxu0 0.0
    %446 = vmatprep.subr.mxu0 0.0
    %447 = vmatpush1.msra.mxu0 0.0
    %448 = vmatprep.subr.mxu0 0.0
    %449 = vmatpush1.msra.mxu0 0.0
    %450 = vmatprep.subr.mxu0 0.0
    %451 = vmatpush1.msra.mxu0 0.0
    %452 = vmatprep.subr.mxu0 0.0
    %453 = vmatpush1.msra.mxu0 0.0
    %454 = vmatprep.subr.mxu0 0.0
    %455 = vmatpush1.msra.mxu0 0.0
    %456 = vmatprep.subr.mxu0 0.0
    %457 = vmatpush1.msra.mxu0 0.0
    %458 = vmatprep.subr.mxu0 0.0
    %459 = vmatpush1.msra.mxu0 0.0
    %460 = vmatprep.subr.mxu0 0.0
    %461 = vmatpush1.msra.mxu0 0.0
    %462 = vmatprep.subr.mxu0 0.0
    %463 = vmatpush1.msra.mxu0 0.0
    %464 = vmatprep.subr.mxu0 0.0
    %465 = vmatpush1.msra.mxu0 0.0
    %466 = vmatprep.subr.mxu0 0.0
    %467 = vmatpush1.msra.mxu0 0.0
    %468 = vmatprep.subr.mxu0 0.0
    %469 = vmatpush1.msra.mxu0 0.0
    %470 = vmatprep.subr.mxu0 0.0
    %471 = vmatpush1.msra.mxu0 0.0
    %472 = vmatprep.subr.mxu0 0.0
    %473 = vmatpush1.msra.mxu0 0.0
    %474 = vmatprep.subr.mxu0 0.0
    %475 = vmatpush1.msra.mxu0 0.0
    %476 = vmatprep.subr.mxu0 0.0
    %477 = vmatpush1.msra.mxu0 0.0
    %478 = vmatprep.subr.mxu0 0.0
    %479 = vmatpush1.msra.mxu0 0.0
    %480 = vmatprep.subr.mxu0 0.0
    %481 = vmatpush1.msra.mxu0 0.0
    %482 = vmatprep.subr.mxu0 0.0
    %483 = vmatpush1.msra.mxu0 0.0
    %484 = vmatprep.subr.mxu0 0.0
    %485 = vmatpush1.msra.mxu0 0.0
    %486 = vmatprep.subr.mxu0 0.0
    %487 = vmatpush1.msra.mxu0 0.0
    %488 = vmatprep.mubr.f32.mxu0 0.0
    %489 = vmatmul.mubr.f32.gmra.mrb[0].mxu0 %v422
    %v490 = vpop.f32.mrb[0].mxu0
    %v491 = vadd.f32 0.0, %v490
    %v492 = vpop.f32.mrb[0].mxu0
    %493 = vdwg.mxu0
    %v495 = vrot.slane %v491, 4
    %v497 = vadd.f32 %v187, %v495
    %v498 = vxor.u32 %v497, 2147483648
    %v499 = vmul.f32 %v498, 1.442695
    %v500 = vpow.pop %v499
    %v501 = vadd.f32 %v500, 1.0
    %v502 = vrcp.pop %v501
    %v503 = vmul.f32 1.0, %v502
    %v504 = vmul.f32 %v503, %v204
    %v505 = vadd.f32 %v504, %v205
    %v507 = vrot.slane %v411, 6
    %v509 = vmul.f32 %v505, %v507
    %511 = vrot.lane.b32.xlu0 %v505, 64
    %v512 = vpop.permute.xlu0 %511
    %v514 = vmul.f32 %v505, %v512
    %516 = vrot.lane.b32.xlu0 %v514, 32
    %v517 = vpop.permute.xlu0 %516
    %v519 = vadd.f32 %v509, %v517
    %v520 = vtanh.pop %v519
    %522 = vrot.lane.b32.xlu0 %v520, 64
    %v523 = vpop.permute.xlu0 %522
    %v525 = vmul.f32 %v505, %v523
    %v527 = vrot.slane %v525, 4
    %528 = vrot.lane.b32.xlu0 %v527, 32
    %v529 = vpop.permute.xlu0 %528
    %v530 = vsel %vm113, %v529, 0
    %532 = vmatprep.subr.mxu0 0.0
    %533 = vmatpush1.msra.mxu0 %v195
    %534 = vmatprep.subr.mxu0 0.0
    %535 = vmatpush1.msra.mxu0 %v196
    %536 = vmatprep.subr.mxu0 0.0
    %537 = vmatpush1.msra.mxu0 %v197
    %538 = vmatprep.subr.mxu0 0.0
    %539 = vmatpush1.msra.mxu0 %v198
    %540 = vmatprep.subr.mxu0 0.0
    %541 = vmatpush1.msra.mxu0 0.0
    %542 = vmatprep.subr.mxu0 0.0
    %543 = vmatpush1.msra.mxu0 0.0
    %544 = vmatprep.subr.mxu0 0.0
    %545 = vmatpush1.msra.mxu0 0.0
    %546 = vmatprep.subr.mxu0 0.0
    %547 = vmatpush1.msra.mxu0 0.0
    %548 = vmatprep.subr.mxu0 0.0
    %549 = vmatpush1.msra.mxu0 0.0
    %550 = vmatprep.subr.mxu0 0.0
    %551 = vmatpush1.msra.mxu0 0.0
    %552 = vmatprep.subr.mxu0 0.0
    %553 = vmatpush1.msra.mxu0 0.0
    %554 = vmatprep.subr.mxu0 0.0
    %555 = vmatpush1.msra.mxu0 0.0
    %556 = vmatprep.subr.mxu0 0.0
    %557 = vmatpush1.msra.mxu0 0.0
    %558 = vmatprep.subr.mxu0 0.0
    %559 = vmatpush1.msra.mxu0 0.0
    %560 = vmatprep.subr.mxu0 0.0
    %561 = vmatpush1.msra.mxu0 0.0
    %562 = vmatprep.subr.mxu0 0.0
    %563 = vmatpush1.msra.mxu0 0.0
    %564 = vmatprep.subr.mxu0 0.0
    %565 = vmatpush1.msra.mxu0 0.0
    %566 = vmatprep.subr.mxu0 0.0
    %567 = vmatpush1.msra.mxu0 0.0
    %568 = vmatprep.subr.mxu0 0.0
    %569 = vmatpush1.msra.mxu0 0.0
    %570 = vmatprep.subr.mxu0 0.0
    %571 = vmatpush1.msra.mxu0 0.0
    %572 = vmatprep.subr.mxu0 0.0
    %573 = vmatpush1.msra.mxu0 0.0
    %574 = vmatprep.subr.mxu0 0.0
    %575 = vmatpush1.msra.mxu0 0.0
    %576 = vmatprep.subr.mxu0 0.0
    %577 = vmatpush1.msra.mxu0 0.0
    %578 = vmatprep.subr.mxu0 0.0
    %579 = vmatpush1.msra.mxu0 0.0
    %580 = vmatprep.subr.mxu0 0.0
    %581 = vmatpush1.msra.mxu0 0.0
    %582 = vmatprep.subr.mxu0 0.0
    %583 = vmatpush1.msra.mxu0 0.0
    %584 = vmatprep.subr.mxu0 0.0
    %585 = vmatpush1.msra.mxu0 0.0
    %586 = vmatprep.subr.mxu0 0.0
    %587 = vmatpush1.msra.mxu0 0.0
    %588 = vmatprep.subr.mxu0 0.0
    %589 = vmatpush1.msra.mxu0 0.0
    %590 = vmatprep.subr.mxu0 0.0
    %591 = vmatpush1.msra.mxu0 0.0
    %592 = vmatprep.subr.mxu0 0.0
    %593 = vmatpush1.msra.mxu0 0.0
    %594 = vmatprep.subr.mxu0 0.0
    %595 = vmatpush1.msra.mxu0 0.0
    %596 = vmatprep.mubr.f32.mxu0 0.0
    %597 = vmatmul.mubr.f32.gmra.mrb[0].mxu0 %v530
    %v598 = vpop.f32.mrb[0].mxu0
    %v599 = vadd.f32 0.0, %v598
    %v600 = vpop.f32.mrb[0].mxu0
    %601 = vdwg.mxu0
    %v603 = vrot.slane %v599, 2
    %v605 = vadd.f32 %v187, %v603
    %v606 = vxor.u32 %v605, 2147483648
    %v607 = vmul.f32 %v606, 1.442695
    %v608 = vpow.pop %v607
    %v609 = vadd.f32 %v608, 1.0
    %v610 = vrcp.pop %v609
    %v611 = vmul.f32 1.0, %v610
    %v612 = vmul.f32 %v611, %v204
    %v613 = vadd.f32 %v612, %v205
    %v615 = vrot.slane %v519, 6
    %v617 = vmul.f32 %v613, %v615
    %619 = vrot.lane.b32.xlu0 %v613, 64
    %v620 = vpop.permute.xlu0 %619
    %v622 = vmul.f32 %v613, %v620
    %624 = vrot.lane.b32.xlu0 %v622, 32
    %v625 = vpop.permute.xlu0 %624
    %v627 = vadd.f32 %v617, %v625
    %v628 = vtanh.pop %v627
    %630 = vrot.lane.b32.xlu0 %v628, 64
    %v631 = vpop.permute.xlu0 %630
    %v633 = vmul.f32 %v613, %v631
    %v635 = vrot.slane %v633, 6
    %636 = vrot.lane.b32.xlu0 %v635, 32
    %v637 = vpop.permute.xlu0 %636
    %v638 = vsel %vm113, %v637, 0
    %640 = vmatprep.subr.mxu0 0.0
    %641 = vmatpush1.msra.mxu0 %v195
    %642 = vmatprep.subr.mxu0 0.0
    %643 = vmatpush1.msra.mxu0 %v196
    %644 = vmatprep.subr.mxu0 0.0
    %645 = vmatpush1.msra.mxu0 %v197
    %646 = vmatprep.subr.mxu0 0.0
    %647 = vmatpush1.msra.mxu0 %v198
    %648 = vmatprep.subr.mxu0 0.0
    %649 = vmatpush1.msra.mxu0 0.0
    %650 = vmatprep.subr.mxu0 0.0
    %651 = vmatpush1.msra.mxu0 0.0
    %652 = vmatprep.subr.mxu0 0.0
    %653 = vmatpush1.msra.mxu0 0.0
    %654 = vmatprep.subr.mxu0 0.0
    %655 = vmatpush1.msra.mxu0 0.0
    %656 = vmatprep.subr.mxu0 0.0
    %657 = vmatpush1.msra.mxu0 0.0
    %658 = vmatprep.subr.mxu0 0.0
    %659 = vmatpush1.msra.mxu0 0.0
    %660 = vmatprep.subr.mxu0 0.0
    %661 = vmatpush1.msra.mxu0 0.0
    %662 = vmatprep.subr.mxu0 0.0
    %663 = vmatpush1.msra.mxu0 0.0
    %664 = vmatprep.subr.mxu0 0.0
    %665 = vmatpush1.msra.mxu0 0.0
    %666 = vmatprep.subr.mxu0 0.0
    %667 = vmatpush1.msra.mxu0 0.0
    %668 = vmatprep.subr.mxu0 0.0
    %669 = vmatpush1.msra.mxu0 0.0
    %670 = vmatprep.subr.mxu0 0.0
    %671 = vmatpush1.msra.mxu0 0.0
    %672 = vmatprep.subr.mxu0 0.0
    %673 = vmatpush1.msra.mxu0 0.0
    %674 = vmatprep.subr.mxu0 0.0
    %675 = vmatpush1.msra.mxu0 0.0
    %676 = vmatprep.subr.mxu0 0.0
    %677 = vmatpush1.msra.mxu0 0.0
    %678 = vmatprep.subr.mxu0 0.0
    %679 = vmatpush1.msra.mxu0 0.0
    %680 = vmatprep.subr.mxu0 0.0
    %681 = vmatpush1.msra.mxu0 0.0
    %682 = vmatprep.subr.mxu0 0.0
    %683 = vmatpush1.msra.mxu0 0.0
    %684 = vmatprep.subr.mxu0 0.0
    %685 = vmatpush1.msra.mxu0 0.0
    %686 = vmatprep.subr.mxu0 0.0
    %687 = vmatpush1.msra.mxu0 0.0
    %688 = vmatprep.subr.mxu0 0.0
    %689 = vmatpush1.msra.mxu0 0.0
    %690 = vmatprep.subr.mxu0 0.0
    %691 = vmatpush1.msra.mxu0 0.0
    %692 = vmatprep.subr.mxu0 0.0
    %693 = vmatpush1.msra.mxu0 0.0
    %694 = vmatprep.subr.mxu0 0.0
    %695 = vmatpush1.msra.mxu0 0.0
    %696 = vmatprep.subr.mxu0 0.0
    %697 = vmatpush1.msra.mxu0 0.0
    %698 = vmatprep.subr.mxu0 0.0
    %699 = vmatpush1.msra.mxu0 0.0
    %700 = vmatprep.subr.mxu0 0.0
    %701 = vmatpush1.msra.mxu0 0.0
    %702 = vmatprep.subr.mxu0 0.0
    %703 = vmatpush1.msra.mxu0 0.0
    %704 = vmatprep.mubr.f32.mxu0 0.0
    %705 = vmatmul.mubr.f32.gmra.mrb[0].mxu0 %v638
    %v706 = vpop.f32.mrb[0].mxu0
    %v707 = vadd.f32 0.0, %v706
    %v708 = vpop.f32.mrb[0].mxu0
    %709 = vdwg.mxu0
    %v710 = vadd.f32 %v192, %v707
    %v711 = vxor.u32 %v710, 2147483648
    %v712 = vmul.f32 %v711, 1.442695
    %v713 = vpow.pop %v712
    %v714 = vadd.f32 %v713, 1.0
    %v715 = vrcp.pop %v714
    %v716 = vmul.f32 1.0, %v715
    %v717 = vmul.f32 %v716, %v204
    %v718 = vadd.f32 %v717, %v205
    %v720 = vrot.slane %v627, 6
    %v722 = vmul.f32 %v718, %v720
    %724 = vrot.lane.b32.xlu0 %v718, 64
    %v725 = vpop.permute.xlu0 %724
    %v727 = vmul.f32 %v718, %v725
    %729 = vrot.lane.b32.xlu0 %v727, 32
    %v730 = vpop.permute.xlu0 %729
    %v732 = vadd.f32 %v722, %v730
    %v733 = vtanh.pop %v732
    %735 = vrot.lane.b32.xlu0 %v733, 64
    %v736 = vpop.permute.xlu0 %735
    %v738 = vmul.f32 %v718, %v736
    %740 = vrot.lane.b32.xlu0 %v738, 32
    %v741 = vpop.permute.xlu0 %740
    %v742 = vsel %vm113, %v741, 0
    %744 = vmatprep.subr.mxu0 0.0
    %745 = vmatpush1.msra.mxu0 %v195
    %746 = vmatprep.subr.mxu0 0.0
    %747 = vmatpush1.msra.mxu0 %v196
    %748 = vmatprep.subr.mxu0 0.0
    %749 = vmatpush1.msra.mxu0 %v197
    %750 = vmatprep.subr.mxu0 0.0
    %751 = vmatpush1.msra.mxu0 %v198
    %752 = vmatprep.subr.mxu0 0.0
    %753 = vmatpush1.msra.mxu0 0.0
    %754 = vmatprep.subr.mxu0 0.0
    %755 = vmatpush1.msra.mxu0 0.0
    %756 = vmatprep.subr.mxu0 0.0
    %757 = vmatpush1.msra.mxu0 0.0
    %758 = vmatprep.subr.mxu0 0.0
    %759 = vmatpush1.msra.mxu0 0.0
    %760 = vmatprep.subr.mxu0 0.0
    %761 = vmatpush1.msra.mxu0 0.0
    %762 = vmatprep.subr.mxu0 0.0
    %763 = vmatpush1.msra.mxu0 0.0
    %764 = vmatprep.subr.mxu0 0.0
    %765 = vmatpush1.msra.mxu0 0.0
    %766 = vmatprep.subr.mxu0 0.0
    %767 = vmatpush1.msra.mxu0 0.0
    %768 = vmatprep.subr.mxu0 0.0
    %769 = vmatpush1.msra.mxu0 0.0
    %770 = vmatprep.subr.mxu0 0.0
    %771 = vmatpush1.msra.mxu0 0.0
    %772 = vmatprep.subr.mxu0 0.0
    %773 = vmatpush1.msra.mxu0 0.0
    %774 = vmatprep.subr.mxu0 0.0
    %775 = vmatpush1.msra.mxu0 0.0
    %776 = vmatprep.subr.mxu0 0.0
    %777 = vmatpush1.msra.mxu0 0.0
    %778 = vmatprep.subr.mxu0 0.0
    %779 = vmatpush1.msra.mxu0 0.0
    %780 = vmatprep.subr.mxu0 0.0
    %781 = vmatpush1.msra.mxu0 0.0
    %782 = vmatprep.subr.mxu0 0.0
    %783 = vmatpush1.msra.mxu0 0.0
    %784 = vmatprep.subr.mxu0 0.0
    %785 = vmatpush1.msra.mxu0 0.0
    %786 = vmatprep.subr.mxu0 0.0
    %787 = vmatpush1.msra.mxu0 0.0
    %788 = vmatprep.subr.mxu0 0.0
    %789 = vmatpush1.msra.mxu0 0.0
    %790 = vmatprep.subr.mxu0 0.0
    %791 = vmatpush1.msra.mxu0 0.0
    %792 = vmatprep.subr.mxu0 0.0
    %793 = vmatpush1.msra.mxu0 0.0
    %794 = vmatprep.subr.mxu0 0.0
    %795 = vmatpush1.msra.mxu0 0.0
    %796 = vmatprep.subr.mxu0 0.0
    %797 = vmatpush1.msra.mxu0 0.0
    %798 = vmatprep.subr.mxu0 0.0
    %799 = vmatpush1.msra.mxu0 0.0
    %800 = vmatprep.subr.mxu0 0.0
    %801 = vmatpush1.msra.mxu0 0.0
    %802 = vmatprep.subr.mxu0 0.0
    %803 = vmatpush1.msra.mxu0 0.0
    %804 = vmatprep.subr.mxu0 0.0
    %805 = vmatpush1.msra.mxu0 0.0
    %806 = vmatprep.subr.mxu0 0.0
    %807 = vmatpush1.msra.mxu0 0.0
    %808 = vmatprep.mubr.f32.mxu0 0.0
    %809 = vmatmul.mubr.f32.gmra.mrb[0].mxu0 %v742
    %v810 = vpop.f32.mrb[0].mxu0
    %v811 = vadd.f32 0.0, %v810
    %v812 = vpop.f32.mrb[0].mxu0
    %813 = vdwg.mxu0
    %v815 = vrot.slane %v811, 6
    %v817 = vadd.f32 %v192, %v815
    %v818 = vxor.u32 %v817, 2147483648
    %v819 = vmul.f32 %v818, 1.442695
    %v820 = vpow.pop %v819
    %v821 = vadd.f32 %v820, 1.0
    %v822 = vrcp.pop %v821
    %v823 = vmul.f32 1.0, %v822
    %v824 = vmul.f32 %v823, %v204
    %v825 = vadd.f32 %v824, %v205
    %v827 = vrot.slane %v732, 6
    %v829 = vmul.f32 %v825, %v827
    %831 = vrot.lane.b32.xlu0 %v825, 64
    %v832 = vpop.permute.xlu0 %831
    %v834 = vmul.f32 %v825, %v832
    %836 = vrot.lane.b32.xlu0 %v834, 32
    %v837 = vpop.permute.xlu0 %836
    %v839 = vadd.f32 %v829, %v837
    %v840 = vtanh.pop %v839
    %842 = vrot.lane.b32.xlu0 %v840, 64
    %v843 = vpop.permute.xlu0 %842
    %v845 = vmul.f32 %v825, %v843
    %v847 = vrot.slane %v845, 2
    %848 = vrot.lane.b32.xlu0 %v847, 32
    %v849 = vpop.permute.xlu0 %848
    %v850 = vsel %vm113, %v849, 0
    %852 = vmatprep.subr.mxu0 0.0
    %853 = vmatpush1.msra.mxu0 %v195
    %854 = vmatprep.subr.mxu0 0.0
    %855 = vmatpush1.msra.mxu0 %v196
    %856 = vmatprep.subr.mxu0 0.0
    %857 = vmatpush1.msra.mxu0 %v197
    %858 = vmatprep.subr.mxu0 0.0
    %859 = vmatpush1.msra.mxu0 %v198
    %860 = vmatprep.subr.mxu0 0.0
    %861 = vmatpush1.msra.mxu0 0.0
    %862 = vmatprep.subr.mxu0 0.0
    %863 = vmatpush1.msra.mxu0 0.0
    %864 = vmatprep.subr.mxu0 0.0
    %865 = vmatpush1.msra.mxu0 0.0
    %866 = vmatprep.subr.mxu0 0.0
    %867 = vmatpush1.msra.mxu0 0.0
    %868 = vmatprep.subr.mxu0 0.0
    %869 = vmatpush1.msra.mxu0 0.0
    %870 = vmatprep.subr.mxu0 0.0
    %871 = vmatpush1.msra.mxu0 0.0
    %872 = vmatprep.subr.mxu0 0.0
    %873 = vmatpush1.msra.mxu0 0.0
    %874 = vmatprep.subr.mxu0 0.0
    %875 = vmatpush1.msra.mxu0 0.0
    %876 = vmatprep.subr.mxu0 0.0
    %877 = vmatpush1.msra.mxu0 0.0
    %878 = vmatprep.subr.mxu0 0.0
    %879 = vmatpush1.msra.mxu0 0.0
    %880 = vmatprep.subr.mxu0 0.0
    %881 = vmatpush1.msra.mxu0 0.0
    %882 = vmatprep.subr.mxu0 0.0
    %883 = vmatpush1.msra.mxu0 0.0
    %884 = vmatprep.subr.mxu0 0.0
    %885 = vmatpush1.msra.mxu0 0.0
    %886 = vmatprep.subr.mxu0 0.0
    %887 = vmatpush1.msra.mxu0 0.0
    %888 = vmatprep.subr.mxu0 0.0
    %889 = vmatpush1.msra.mxu0 0.0
    %890 = vmatprep.subr.mxu0 0.0
    %891 = vmatpush1.msra.mxu0 0.0
    %892 = vmatprep.subr.mxu0 0.0
    %893 = vmatpush1.msra.mxu0 0.0
    %894 = vmatprep.subr.mxu0 0.0
    %895 = vmatpush1.msra.mxu0 0.0
    %896 = vmatprep.subr.mxu0 0.0
    %897 = vmatpush1.msra.mxu0 0.0
    %898 = vmatprep.subr.mxu0 0.0
    %899 = vmatpush1.msra.mxu0 0.0
    %900 = vmatprep.subr.mxu0 0.0
    %901 = vmatpush1.msra.mxu0 0.0
    %902 = vmatprep.subr.mxu0 0.0
    %903 = vmatpush1.msra.mxu0 0.0
    %904 = vmatprep.subr.mxu0 0.0
    %905 = vmatpush1.msra.mxu0 0.0
    %906 = vmatprep.subr.mxu0 0.0
    %907 = vmatpush1.msra.mxu0 0.0
    %908 = vmatprep.subr.mxu0 0.0
    %909 = vmatpush1.msra.mxu0 0.0
    %910 = vmatprep.subr.mxu0 0.0
    %911 = vmatpush1.msra.mxu0 0.0
    %912 = vmatprep.subr.mxu0 0.0
    %913 = vmatpush1.msra.mxu0 0.0
    %914 = vmatprep.subr.mxu0 0.0
    %915 = vmatpush1.msra.mxu0 0.0
    %916 = vmatprep.mubr.f32.mxu0 0.0
    %917 = vmatmul.mubr.f32.gmra.mrb[0].mxu0 %v850
    %v918 = vpop.f32.mrb[0].mxu0
    %v919 = vadd.f32 0.0, %v918
    %v920 = vpop.f32.mrb[0].mxu0
    %921 = vdwg.mxu0
    %v923 = vrot.slane %v919, 4
    %v925 = vadd.f32 %v192, %v923
    %v926 = vxor.u32 %v925, 2147483648
    %v927 = vmul.f32 %v926, 1.442695
    %v928 = vpow.pop %v927
    %v929 = vadd.f32 %v928, 1.0
    %v930 = vrcp.pop %v929
    %v931 = vmul.f32 1.0, %v930
    %v932 = vmul.f32 %v931, %v204
    %v933 = vadd.f32 %v932, %v205
    %v935 = vrot.slane %v839, 6
    %v937 = vmul.f32 %v933, %v935
    %939 = vrot.lane.b32.xlu0 %v933, 64
    %v940 = vpop.permute.xlu0 %939
    %v942 = vmul.f32 %v933, %v940
    %944 = vrot.lane.b32.xlu0 %v942, 32
    %v945 = vpop.permute.xlu0 %944
    %v947 = vadd.f32 %v937, %v945
    %v948 = vtanh.pop %v947
    %950 = vrot.lane.b32.xlu0 %v948, 64
    %v951 = vpop.permute.xlu0 %950
    %v953 = vmul.f32 %v933, %v951
    %v955 = vrot.slane %v953, 4
    %956 = vrot.lane.b32.xlu0 %v955, 32
    %v957 = vpop.permute.xlu0 %956
    %v958 = vsel %vm113, %v957, 0
    %960 = vmatprep.subr.mxu0 0.0
    %961 = vmatpush1.msra.mxu0 %v195
    %962 = vmatprep.subr.mxu0 0.0
    %963 = vmatpush1.msra.mxu0 %v196
    %964 = vmatprep.subr.mxu0 0.0
    %965 = vmatpush1.msra.mxu0 %v197
    %966 = vmatprep.subr.mxu0 0.0
    %967 = vmatpush1.msra.mxu0 %v198
    %968 = vmatprep.subr.mxu0 0.0
    %969 = vmatpush1.msra.mxu0 0.0
    %970 = vmatprep.subr.mxu0 0.0
    %971 = vmatpush1.msra.mxu0 0.0
    %972 = vmatprep.subr.mxu0 0.0
    %973 = vmatpush1.msra.mxu0 0.0
    %974 = vmatprep.subr.mxu0 0.0
    %975 = vmatpush1.msra.mxu0 0.0
    %976 = vmatprep.subr.mxu0 0.0
    %977 = vmatpush1.msra.mxu0 0.0
    %978 = vmatprep.subr.mxu0 0.0
    %979 = vmatpush1.msra.mxu0 0.0
    %980 = vmatprep.subr.mxu0 0.0
    %981 = vmatpush1.msra.mxu0 0.0
    %982 = vmatprep.subr.mxu0 0.0
    %983 = vmatpush1.msra.mxu0 0.0
    %984 = vmatprep.subr.mxu0 0.0
    %985 = vmatpush1.msra.mxu0 0.0
    %986 = vmatprep.subr.mxu0 0.0
    %987 = vmatpush1.msra.mxu0 0.0
    %988 = vmatprep.subr.mxu0 0.0
    %989 = vmatpush1.msra.mxu0 0.0
    %990 = vmatprep.subr.mxu0 0.0
    %991 = vmatpush1.msra.mxu0 0.0
    %992 = vmatprep.subr.mxu0 0.0
    %993 = vmatpush1.msra.mxu0 0.0
    %994 = vmatprep.subr.mxu0 0.0
    %995 = vmatpush1.msra.mxu0 0.0
    %996 = vmatprep.subr.mxu0 0.0
    %997 = vmatpush1.msra.mxu0 0.0
    %998 = vmatprep.subr.mxu0 0.0
    %999 = vmatpush1.msra.mxu0 0.0
    %1000 = vmatprep.subr.mxu0 0.0
    %1001 = vmatpush1.msra.mxu0 0.0
    %1002 = vmatprep.subr.mxu0 0.0
    %1003 = vmatpush1.msra.mxu0 0.0
    %1004 = vmatprep.subr.mxu0 0.0
    %1005 = vmatpush1.msra.mxu0 0.0
    %1006 = vmatprep.subr.mxu0 0.0
    %1007 = vmatpush1.msra.mxu0 0.0
    %1008 = vmatprep.subr.mxu0 0.0
    %1009 = vmatpush1.msra.mxu0 0.0
    %1010 = vmatprep.subr.mxu0 0.0
    %1011 = vmatpush1.msra.mxu0 0.0
    %1012 = vmatprep.subr.mxu0 0.0
    %1013 = vmatpush1.msra.mxu0 0.0
    %1014 = vmatprep.subr.mxu0 0.0
    %1015 = vmatpush1.msra.mxu0 0.0
    %1016 = vmatprep.subr.mxu0 0.0
    %1017 = vmatpush1.msra.mxu0 0.0
    %1018 = vmatprep.subr.mxu0 0.0
    %1019 = vmatpush1.msra.mxu0 0.0
    %1020 = vmatprep.subr.mxu0 0.0
    %1021 = vmatpush1.msra.mxu0 0.0
    %1022 = vmatprep.subr.mxu0 0.0
    %1023 = vmatpush1.msra.mxu0 0.0
    %1024 = vmatprep.mubr.f32.mxu0 0.0
    %1025 = vmatmul.mubr.f32.gmra.mrb[0].mxu0 %v958
    %v1026 = vpop.f32.mrb[0].mxu0
    %v1027 = vadd.f32 0.0, %v1026
    %v1028 = vpop.f32.mrb[0].mxu0
    %1029 = vdwg.mxu0
    %v1031 = vrot.slane %v1027, 2
    %v1033 = vadd.f32 %v192, %v1031
    %v1034 = vxor.u32 %v1033, 2147483648
    %v1035 = vmul.f32 %v1034, 1.442695
    %v1036 = vpow.pop %v1035
    %v1037 = vadd.f32 %v1036, 1.0
    %v1038 = vrcp.pop %v1037
    %v1039 = vmul.f32 1.0, %v1038
    %v1040 = vmul.f32 %v1039, %v204
    %v1041 = vadd.f32 %v1040, %v205
    %v1043 = vrot.slane %v947, 6
    %v1045 = vmul.f32 %v1041, %v1043
    %1047 = vrot.lane.b32.xlu0 %v1041, 64
    %v1048 = vpop.permute.xlu0 %1047
    %v1050 = vmul.f32 %v1041, %v1048
    %1052 = vrot.lane.b32.xlu0 %v1050, 32
    %v1053 = vpop.permute.xlu0 %1052
    %v1055 = vadd.f32 %v1045, %v1053
    %v1056 = vtanh.pop %v1055
    %1058 = vrot.lane.b32.xlu0 %v1056, 64
    %v1059 = vpop.permute.xlu0 %1058
    %v1061 = vmul.f32 %v1041, %v1059
    %1063 = vrot.lane.b32.xlu0 %v1061, 32
    %v1064 = vpop.permute.xlu0 %1063
    %vm1066 = vcmask 261126
    %1067 = vst.msk [vmem:[#allocation2 - $0x6] sm:$0xc0] %vm1066, %v1064
    %1069 = vrot.lane.b32.xlu0 %v1055, 96
    %v1070 = vpop.permute.xlu0 %1069
    %1072 = vst.msk [vmem:[#allocation3 - $0x6] sm:$0xc0] %vm1066, %v1070
    %vm1073 = vcmask 1041408
    %v1074 = vsel %vm1073, %v310, %v417
    %vm1075 = vcmask 1043456
    %v1076 = vsel %vm1075, %v1074, %v525
    %vm1077 = vcmask 1045504
    %v1078 = vsel %vm1077, %v1076, %v633
    %v1079 = vsel %vm1073, %v738, %v845
    %v1080 = vsel %vm1075, %v1079, %v953
    %v1081 = vsel %vm1077, %v1080, %v1061
    %v1082 = vld [vmem:[#allocation10] sm:$0xff]
    %v1083 = vld [vmem:[#allocation10 + $0x8] sm:$0xff]
    %v1084 = vld [vmem:[#allocation10 + $0x10] sm:$0xff]
    %v1085 = vld [vmem:[#allocation10 + $0x18] sm:$0xff]
    %v1086 = vld [vmem:[%s7] sm:$0x1]
    %v1088 = vlaneseq
    %v1089 = vshrl.u32 %v1088, 7
    %v1090 = vsub.s32 0, %v1089
    %v1091 = vrot.slane %v1086, %v1090
    %1095 = vrot.lane.b32.xlu0 %v1078, 32
    %v1096 = vpop.permute.xlu0 %1095
    %1097 = vrot.lane.b32.xlu0 %v1081, 32
    %v1098 = vpop.permute.xlu0 %1097
    %v1099 = vsel %vm113, %v1096, 0
    %v1101 = vsel %vm113, %v1098, 0
    %1103 = vmatprep.subr.mxu0 0.0
    %1104 = vmatpush1.msra.mxu0 %v1082
    %1105 = vmatprep.subr.mxu0 0.0
    %1106 = vmatpush1.msra.mxu0 %v1083
    %1107 = vmatprep.subr.mxu0 0.0
    %1108 = vmatpush1.msra.mxu0 %v1084
    %1109 = vmatprep.subr.mxu0 0.0
    %1110 = vmatpush1.msra.mxu0 %v1085
    %1111 = vmatprep.subr.mxu0 0.0
    %1112 = vmatpush1.msra.mxu0 0.0
    %1113 = vmatprep.subr.mxu0 0.0
    %1114 = vmatpush1.msra.mxu0 0.0
    %1115 = vmatprep.subr.mxu0 0.0
    %1116 = vmatpush1.msra.mxu0 0.0
    %1117 = vmatprep.subr.mxu0 0.0
    %1118 = vmatpush1.msra.mxu0 0.0
    %1119 = vmatprep.subr.mxu0 0.0
    %1120 = vmatpush1.msra.mxu0 0.0
    %1121 = vmatprep.subr.mxu0 0.0
    %1122 = vmatpush1.msra.mxu0 0.0
    %1123 = vmatprep.subr.mxu0 0.0
    %1124 = vmatpush1.msra.mxu0 0.0
    %1125 = vmatprep.subr.mxu0 0.0
    %1126 = vmatpush1.msra.mxu0 0.0
    %1127 = vmatprep.subr.mxu0 0.0
    %1128 = vmatpush1.msra.mxu0 0.0
    %1129 = vmatprep.subr.mxu0 0.0
    %1130 = vmatpush1.msra.mxu0 0.0
    %1131 = vmatprep.subr.mxu0 0.0
    %1132 = vmatpush1.msra.mxu0 0.0
    %1133 = vmatprep.subr.mxu0 0.0
    %1134 = vmatpush1.msra.mxu0 0.0
    %1135 = vmatprep.subr.mxu0 0.0
    %1136 = vmatpush1.msra.mxu0 0.0
    %1137 = vmatprep.subr.mxu0 0.0
    %1138 = vmatpush1.msra.mxu0 0.0
    %1139 = vmatprep.subr.mxu0 0.0
    %1140 = vmatpush1.msra.mxu0 0.0
    %1141 = vmatprep.subr.mxu0 0.0
    %1142 = vmatpush1.msra.mxu0 0.0
    %1143 = vmatprep.subr.mxu0 0.0
    %1144 = vmatpush1.msra.mxu0 0.0
    %1145 = vmatprep.subr.mxu0 0.0
    %1146 = vmatpush1.msra.mxu0 0.0
    %1147 = vmatprep.subr.mxu0 0.0
    %1148 = vmatpush1.msra.mxu0 0.0
    %1149 = vmatprep.subr.mxu0 0.0
    %1150 = vmatpush1.msra.mxu0 0.0
    %1151 = vmatprep.subr.mxu0 0.0
    %1152 = vmatpush1.msra.mxu0 0.0
    %1153 = vmatprep.subr.mxu0 0.0
    %1154 = vmatpush1.msra.mxu0 0.0
    %1155 = vmatprep.subr.mxu0 0.0
    %1156 = vmatpush1.msra.mxu0 0.0
    %1157 = vmatprep.subr.mxu0 0.0
    %1158 = vmatpush1.msra.mxu0 0.0
    %1159 = vmatprep.subr.mxu0 0.0
    %1160 = vmatpush1.msra.mxu0 0.0
    %1161 = vmatprep.subr.mxu0 0.0
    %1162 = vmatpush1.msra.mxu0 0.0
    %1163 = vmatprep.subr.mxu0 0.0
    %1164 = vmatpush1.msra.mxu0 0.0
    %1165 = vmatprep.subr.mxu0 0.0
    %1166 = vmatpush1.msra.mxu0 0.0
    %1167 = vmatprep.mubr.f32.mxu0 0.0
    %1168 = vmatmul.mubr.f32.gmra.mrb[0].mxu0 %v1099
    %v1169 = vpop.f32.mrb[0].mxu0
    %v1170 = vadd.f32 %v1091, %v1169
    %v1171 = vpop.f32.mrb[0].mxu0
    %1172 = vmatprep.mubr.f32.mxu0 0.0
    %1173 = vmatmul.mubr.f32.gmra.mrb[0].mxu0 %v1101
    %v1174 = vpop.f32.mrb[0].mxu0
    %v1175 = vadd.f32 %v1091, %v1174
    %v1176 = vpop.f32.mrb[0].mxu0
    %1177 = vdwg.mxu0
    %1178 = vst [vmem:[#allocation12] sm:$0xff] %v1170
    %1179 = vst [vmem:[#allocation12 + $0x8] sm:$0xff] %v1175
    // Predicated region
    $region54: #{tpu_custom_call.1} parent=1 // pred_check
      %p1180 = pneg %p89
    $region55: #{tpu_custom_call.1} parent=1 // pred_check_branch
      %1182 = sbr.rel (%p1180) target = $region57
    $region56: #{tpu_custom_call.1} parent=1 // pred_region
      %1183 = vst.msk [vmem:[#allocation13 - $0x6] sm:$0xc0] %vm1066, %v1064
      %1184 = vst.msk [vmem:[#allocation15 - $0x6] sm:$0xc0] %vm1066, %v1070
    $region57: #{tpu_custom_call.1} parent=1 // pred_fallthru
      _
    // Predicated region
    $region58: #{tpu_custom_call.1} parent=1 // pred_check
      _
    $region59: #{tpu_custom_call.1} parent=1 // pred_check_branch
      %1186 = sbr.rel (0) target = $region61
    $region60: #{tpu_custom_call.1} parent=1 // pred_region
      %s1188 = ssub.s32 256, 256
      %1189 = vsyncadd [#allocation6], %s1188
      %s1190 = sshll.u32 [#allocation12], 4
      %s1191 = int_to_ptr.vmem [resolvable:$true] %s1190
      %1196 = dma.vmem_to_hbm [thread:$0]  %s1191, 256, %s8, [#allocation6], 128, 128, 8
    $region61: #{tpu_custom_call.1} parent=1 // pred_fallthru
      _
    // Predicated region
    $region62: #{tpu_custom_call.1} parent=1 // pred_check
      _
    $region63: #{tpu_custom_call.1} parent=1 // pred_check_branch
      %1198 = sbr.rel (0) target = $region65
    $region64: #{tpu_custom_call.1} parent=1 // pred_region
      %s1200 = ssub.s32 32, 32
      %1201 = vsyncadd [#allocation14], %s1200
      %s1203 = sshll.u32 [#allocation13], 4
      %s1204 = int_to_ptr.vmem [resolvable:$true] %s1203
      %1206 = dma.vmem_to_hbm [thread:$0]  %s1204, 32, %s9, [#allocation14]
    $region65: #{tpu_custom_call.1} parent=1 // pred_fallthru
      _
    // Predicated region
    $region66: #{tpu_custom_call.1} parent=1 // pred_check
      _
    $region67: #{tpu_custom_call.1} parent=1 // pred_check_branch
      %1208 = sbr.rel (0) target = $region69
    $region68: #{tpu_custom_call.1} parent=1 // pred_region
      %s1210 = ssub.s32 32, 32
      %1211 = vsyncadd [#allocation14], %s1210
      %s1213 = sshll.u32 [#allocation15], 4
      %s1214 = int_to_ptr.vmem [resolvable:$true] %s1213
      %1216 = dma.vmem_to_hbm [thread:$0]  %s1214, 32, %s10, [#allocation14]
    $region69: #{tpu_custom_call.1} parent=1 // pred_fallthru
      _
    // Predicated region
    $region70: #{tpu_custom_call.1} parent=1 // pred_check
      _
    $region71: #{tpu_custom_call.1} parent=1 // pred_check_branch
      %1218 = sbr.rel (0) target = $region73
    $region72: #{tpu_custom_call.1} parent=1 // pred_region
      %1219 = dma.done [#allocation6], 256
    $region73: #{tpu_custom_call.1} parent=1 // pred_fallthru
      _
    // Predicated region
    $region74: #{tpu_custom_call.1} parent=1 // pred_check
      _
    $region75: #{tpu_custom_call.1} parent=1 // pred_check_branch
      %1221 = sbr.rel (0) target = $region77
    $region76: #{tpu_custom_call.1} parent=1 // pred_region
      %1222 = dma.done [#allocation14], 32
    $region77: #{tpu_custom_call.1} parent=1 // pred_fallthru
      _
    // Predicated region
    $region78: #{tpu_custom_call.1} parent=1 // pred_check
      _
    $region79: #{tpu_custom_call.1} parent=1 // pred_check_branch
      %1224 = sbr.rel (0) target = $region81
    $region80: #{tpu_custom_call.1} parent=1 // pred_region
      %1225 = dma.done [#allocation14], 32
    $region81: #{tpu_custom_call.1} parent=1 // pred_fallthru
      _
    %1226 = vsyncpa [#allocation5], 1
    %1227 = vsyncpa [#allocation8], 1
    %1228 = vsyncpa [#allocation11], 1
    %1229 = vsyncpa [#allocation6], 1
    %1230 = vsyncpa [#allocation14], 1

</llo_original>
